<compile_context>
chip_gen: v6e
topology: v6e:2x2x1
jax: 0.10.0
libtpu: 0.0.40
codegen_flags: <defaults>
</compile_context>

<pallas_src>
import functools

import jax
import jax.numpy as jnp
from jax import lax
from jax.experimental import pallas as pl
from jax.experimental.pallas import tpu as pltpu

EPS = 1e-5  # PyG InstanceNorm default eps


# --------------------------------------------------------------------------------------
# Kernel 1: per-super-tile GCN stack (A_hat @ (XW) + b, InstanceNorm, ReLU, mean-pool)
# --------------------------------------------------------------------------------------
def gcn_kernel(seg_ref,                       # [1, tile_n, 1]  f32  (1/n_g on valid rows, else 0)
               h0_ref,                        # [1, tile_n, c1] bf16 (InstanceNorm(x) @ W1, packed)
               a_ref,                         # [1, tile_n, tile_n] bf16 block-diag A_hat
               b1_ref, w2_ref, b2_ref, w3_ref, b3_ref,
               nw_ref, nb_ref,                # InstanceNorm scalar affine (SMEM)
               out_ref,                       # [1, gpt, c3] f32 pooled output
               *, gpt, slot):
    f32, bf16 = jnp.float32, jnp.bfloat16
    tile_n = a_ref.shape[1]

    nw = nw_ref[0]
    nb = nb_ref[0]
    a = a_ref[0]                                           # [tile_n, tile_n] bf16
    s = seg_ref[0].reshape(gpt, slot, 1)                   # per-node 1/n segment scale (f32)

    def inorm_relu(h2d):
        # h2d: [tile_n, c] f32 -> per-graph InstanceNorm (scalar affine) + ReLU -> bf16
        c = h2d.shape[1]
        h = h2d.reshape(gpt, slot, c)
        hs = h * s                                         # one masked pass
        mean = jnp.sum(hs, axis=1, keepdims=True)          # [gpt, 1, c]
        var = jnp.maximum(jnp.sum(hs * h, axis=1, keepdims=True) - mean * mean, 0.0)
        scale = lax.rsqrt(var + EPS) * nw                  # fold nw into the rsqrt factor
        y = h * scale + (nb - mean * scale)
        return jnp.maximum(y, 0.0).reshape(tile_n, c).astype(bf16)

    def gcn(h_bf, w_ref, b_ref):
        # A_hat @ (X @ W) + b  -- bf16 operands, f32 accumulation
        hw = jnp.dot(h_bf, w_ref[...], preferred_element_type=f32)
        return jnp.dot(a, hw.astype(bf16), preferred_element_type=f32) + b_ref[...]

    # Layer 1: X @ W1 already folded into h0 in the wrapper.
    h = jnp.dot(a, h0_ref[0], preferred_element_type=f32) + b1_ref[...]
    h = inorm_relu(h)
    h = inorm_relu(gcn(h, w2_ref, b2_ref))
    h = inorm_relu(gcn(h, w3_ref, b3_ref))

    # global mean pool per graph -> [gpt, c3]  (lane-dense 128-wide store)
    pooled = jnp.sum(h.astype(f32).reshape(gpt, slot, -1) * s, axis=1)
    out_ref[0] = pooled


# --------------------------------------------------------------------------------------
# Kernel 2: MLP head for all graphs at once (single step, full MXU row utilization)
# --------------------------------------------------------------------------------------
def head_kernel(p_ref, l1w_ref, l1b_ref, l2w_ref, l2b_ref, o_ref):
    f32, bf16 = jnp.float32, jnp.bfloat16
    z = jnp.dot(p_ref[...], l1w_ref[...], preferred_element_type=f32) + l1b_ref[...]
    z = jnp.maximum(z, 0.0).astype(bf16)
    o_ref[...] = jnp.dot(z, l2w_ref[...], preferred_element_type=f32) + l2b_ref[...]


def _round_up(v, m):
    return ((v + m - 1) // m) * m


def _next_pow2(v):
    return 1 << (int(v) - 1).bit_length()


def molbace_forward(x, edge_index, batch, params, num_graphs, num_tasks,
                    max_nodes_per_graph, tile_rows=128):
    """Block-diagonal multi-graph super-tile Pallas forward.

    Assumes `batch` is sorted / node-contiguous (standard PyG batching) and graphs are
    simple (duplicate edges collapse to weight 1).
    `tile_rows` should be 128 (v5e) or 256 (v6e / v7x), a power of two.
    """
    f32, bf16 = jnp.float32, jnp.bfloat16
    n_nodes, num_feat = x.shape

    # --- tile geometry --------------------------------------------------------------
    slot = _next_pow2(max(int(max_nodes_per_graph), 16))   # per-graph node slot (>=16 for bf16)
    if slot >= tile_rows:
        tile_n = _round_up(slot, 128)
        gpt = 1
    else:
        tile_n = tile_rows                                  # multiple of 128 -> lane/sublane dense
        gpt = tile_n // slot                                # graphs packed per super-tile
    num_tiles = -(-num_graphs // gpt)
    total_rows = num_tiles * tile_n

    h1 = params["w1"].shape[1]
    h2 = params["w2"].shape[1]
    h3 = params["w3"].shape[1]
    c1, c2, c3 = (_round_up(h, 128) for h in (h1, h2, h3))
    t_pad = _round_up(max(num_tasks, 128), 128)

    nw = params["norm_w"].reshape(()).astype(f32)
    nb = params["norm_b"].reshape(()).astype(f32)

    # --- per-graph bookkeeping (one-hot / matmul based, no segment scatters) ---------
    batch = batch.astype(jnp.int32)
    onehot_g = (batch[:, None] == jnp.arange(num_graphs, dtype=jnp.int32)[None, :]).astype(f32)
    counts = jnp.sum(onehot_g, axis=0)                      # [G]
    inv_n = 1.0 / jnp.maximum(counts, 1.0)
    counts_i = counts.astype(jnp.int32)
    starts = jnp.cumsum(counts_i) - counts_i
    local = jnp.arange(n_nodes, dtype=jnp.int32) - starts[batch]

    # --- first InstanceNorm + X @ W1 folded into the wrapper (tiny, cuts slab DMA) ---
    mean_g = (onehot_g.T @ x) * inv_n[:, None]               # [G, F]
    sq_g = (onehot_g.T @ (x * x)) * inv_n[:, None]
    rstd_g = lax.rsqrt(jnp.maximum(sq_g - mean_g * mean_g, 0.0) + EPS)
    xn = (x - onehot_g @ mean_g) * (onehot_g @ rstd_g) * nw + nb
    h0 = xn @ params["w1"].astype(f32)                       # [N, h1]

    # --- pack node rows into super-tile slabs (one-hot matmul) -----------------------
    rows = batch * slot + local                               # global padded row per node
    pack = (rows[:, None] == jnp.arange(total_rows, dtype=jnp.int32)[None, :]).astype(f32)
    h0_slab = pack.T @ h0                                     # [total_rows, h1]
    h0_slab = jnp.pad(h0_slab, ((0, 0), (0, c1 - h1))).astype(bf16)
    h0_slab = h0_slab.reshape(num_tiles, tile_n, c1)
    seg = (pack.T @ inv_n[batch][:, None]).reshape(num_tiles, tile_n, 1)   # f32

    # --- block-diagonal GCN-normalized adjacency with self loops ---------------------
    # TODO(synk): edge-list -> dense block packing is input-pipeline work (XLA scatters
    # serialize on TPU); duplicate edges collapse to weight 1 (simple-graph assumption).
    src, dst = edge_index[0], edge_index[1]
    t_edge = batch[src] // gpt
    A = jnp.zeros((num_tiles, tile_n, tile_n), f32)
    A = A.at[t_edge, rows[dst] % tile_n, rows[src] % tile_n].set(1.0)
    A = A.at[batch // gpt, rows % tile_n, rows % tile_n].set(1.0)          # self loops
    deg = jnp.clip(jnp.sum(A, axis=2), 1.0, None)             # padded rows stay zero
    dis = lax.rsqrt(deg)
    A_hat = (dis[:, :, None] * A * dis[:, None, :]).astype(bf16)

    # --- GCN weights: bf16 MXU operands zero-padded to lane slabs, f32 biases --------
    w2p = jnp.pad(params["w2"], ((0, c1 - h1), (0, c2 - h2))).astype(bf16)
    w3p = jnp.pad(params["w3"], ((0, c2 - h2), (0, c3 - h3))).astype(bf16)
    b1p = jnp.pad(params["b1"], ((0, 0), (0, c1 - h1))).astype(f32)
    b2p = jnp.pad(params["b2"], ((0, 0), (0, c2 - h2))).astype(f32)
    b3p = jnp.pad(params["b3"], ((0, 0), (0, c3 - h3))).astype(f32)
    nw_arr = nw.reshape((1,))
    nb_arr = nb.reshape((1,))

    per_tile = lambda shape: pl.BlockSpec(shape, lambda t: (0,) * len(shape))
    smem = pl.BlockSpec(memory_space=pltpu.MemorySpace.SMEM)

    grid_spec = pltpu.PrefetchScalarGridSpec(
        num_scalar_prefetch=0,
        grid=(num_tiles,),
        in_specs=[
            pl.BlockSpec((1, tile_n, 1), lambda t: (t, 0, 0)),        # seg scale
            pl.BlockSpec((1, tile_n, c1), lambda t: (t, 0, 0)),       # h0 slab
            pl.BlockSpec((1, tile_n, tile_n), lambda t: (t, 0, 0)),   # A_hat
            per_tile((1, c1)),                                        # b1 (resident)
            per_tile((c1, c2)),                                       # w2
            per_tile((1, c2)),                                        # b2
            per_tile((c2, c3)),                                       # w3
            per_tile((1, c3)),                                        # b3
            smem, smem,                                               # nw, nb
        ],
        out_specs=pl.BlockSpec((1, gpt, c3), lambda t: (t, 0, 0)),
    )

    flops = int(num_tiles * (2 * tile_n * tile_n * (c1 + c2 + c3)
                             + 2 * tile_n * (c1 * c2 + c2 * c3)))
    transcendentals = int(num_tiles * gpt * (c1 + c2 + c3))
    bytes_accessed = int(seg.size * 4 + h0_slab.size * 2 + A_hat.size * 2
                         + (w2p.size + w3p.size) * 2
                         + (b1p.size + b2p.size + b3p.size) * 4
                         + num_tiles * gpt * c3 * 4)

    pooled = pl.pallas_call(
        functools.partial(gcn_kernel, gpt=gpt, slot=slot),
        out_shape=jax.ShapeDtypeStruct((num_tiles, gpt, c3), f32),
        grid_spec=grid_spec,
        compiler_params=pltpu.CompilerParams(
            dimension_semantics=("parallel",),       # super-tiles split across TCs on v7x
            vmem_limit_bytes=32 * 1024 * 1024,
        ),
        cost_estimate=pl.CostEstimate(flops=flops,
                                      transcendentals=transcendentals,
                                      bytes_accessed=bytes_accessed),
    )(seg, h0_slab, A_hat, b1p, w2p, b2p, w3p, b3p, nw_arr, nb_arr)

    # --- MLP head for all graphs at once (M = G, single Pallas step) -----------------
    pooled_rows = pooled.reshape(num_tiles * gpt, c3).astype(bf16)
    l1w = jnp.pad(params["l1w"], ((0, c3 - h3), (0, 0))).astype(bf16)      # zero rows: no leak
    l1b = params["l1b"].astype(f32)
    l2w = jnp.pad(params["l2w"], ((0, 0), (0, t_pad - num_tasks))).astype(bf16)
    l2b = jnp.pad(params["l2b"], ((0, 0), (0, t_pad - num_tasks))).astype(f32)

    head_out = pl.pallas_call(
        head_kernel,
        out_shape=jax.ShapeDtypeStruct((num_tiles * gpt, t_pad), f32),
    )(pooled_rows, l1w, l1b, l2w, l2b)

    return head_out[:num_graphs, :num_tasks]


def init_params(key, num_features, hidden, num_tasks):
    ks = jax.random.split(key, 5)

    def glorot(k, fan_in, fan_out):
        limit = jnp.sqrt(6.0 / (fan_in + fan_out))
        return jax.random.uniform(k, (fan_in, fan_out), jnp.float32, -limit, limit)

    h1, h2, h3 = hidden, hidden * 2, hidden * 4
    params = {
        # GCNConv weights (glorot) + zero bias, stored as [in, out]
        "w1": glorot(ks[0], num_features, h1), "b1": jnp.zeros((1, h1), jnp.float32),
        "w2": glorot(ks[1], h1, h2),           "b2": jnp.zeros((1, h2), jnp.float32),
        "w3": glorot(ks[2], h2, h3),           "b3": jnp.zeros((1, h3), jnp.float32),
        # Shared InstanceNorm(1, affine=True): weight=1, bias=0 (PyTorch default init)
        "norm_w": jnp.ones((1, 1), jnp.float32),
        "norm_b": jnp.zeros((1, 1), jnp.float32),
        # MLP head
        "l1w": glorot(ks[3], h3, 512), "l1b": jnp.zeros((1, 512), jnp.float32),
        "l2w": glorot(ks[4], 512, num_tasks), "l2b": jnp.zeros((1, num_tasks), jnp.float32),
    }
    # TODO(synk): conv4 (hidden*4 -> hidden*8) is defined in __init__ but never used in
    # forward(), so it is intentionally not materialized here.
    return params


if __name__ == "__main__":
    key = jax.random.PRNGKey(0)
    k_x, k_p = jax.random.split(key)

    # small synthetic "batch of molecular graphs"
    NUM_FEATURES = 9     # MolBACE node feature dim
    HIDDEN = 32
    NUM_TASKS = 1
    G = 2                # graphs in batch
    NODES_PER_GRAPH = 8
    N = G * NODES_PER_GRAPH

    x = jax.random.normal(k_x, (N, NUM_FEATURES), jnp.float32)
    batch = jnp.repeat(jnp.arange(G, dtype=jnp.int32), NODES_PER_GRAPH)

    # undirected chains inside each graph
    src_list, dst_list = [], []
    for g0 in range(0, N, NODES_PER_GRAPH):
        for i in range(NODES_PER_GRAPH - 1):
            a, b = g0 + i, g0 + i + 1
            src_list += [a, b]
            dst_list += [b, a]
    edge_index = jnp.array([src_list, dst_list], dtype=jnp.int32)

    params = init_params(k_p, NUM_FEATURES, HIDDEN, NUM_TASKS)

    out = molbace_forward(x, edge_index, batch, params,
                          num_graphs=G, num_tasks=NUM_TASKS,
                          max_nodes_per_graph=NODES_PER_GRAPH)
    out = jax.block_until_ready(out)
    assert out.shape == (G, NUM_TASKS)
    print("KERNEL_OK")
</pallas_src>

<mosaic_0001>
module attributes {stable_mosaic.version = 11 : i64} {
  func.func @gcn_kernel(%arg0: i32, %arg1: memref<1x128x1xf32, #tpu.memory_space<vmem>>, %arg2: memref<1x128x128xbf16, #tpu.memory_space<vmem>>, %arg3: memref<1x128x128xbf16, #tpu.memory_space<vmem>>, %arg4: memref<1x128xf32, #tpu.memory_space<vmem>>, %arg5: memref<128x128xbf16, #tpu.memory_space<vmem>>, %arg6: memref<1x128xf32, #tpu.memory_space<vmem>>, %arg7: memref<128x128xbf16, #tpu.memory_space<vmem>>, %arg8: memref<1x128xf32, #tpu.memory_space<vmem>>, %arg9: memref<1xf32, #tpu.memory_space<smem>>, %arg10: memref<1xf32, #tpu.memory_space<smem>>, %arg11: memref<1x8x128xf32, #tpu.memory_space<vmem>>) attributes {dimension_semantics = [#tpu.dimension_semantics<parallel>], iteration_bounds = array<i64: 1>, scalar_prefetch = 0 : i64, scratch_operands = 0 : i64, tpu.core_type = #tpu.core_type<tc>, window_params = [{transform_indices = @transform_0, window_bounds = array<i64: 1, 128, 1>}, {transform_indices = @transform_1, window_bounds = array<i64: 1, 128, 128>}, {transform_indices = @transform_2, window_bounds = array<i64: 1, 128, 128>}, {pipeline_mode = #tpu.pipeline_mode<synchronous>, transform_indices = @transform_3, window_bounds = array<i64: 1, 128>}, {pipeline_mode = #tpu.pipeline_mode<synchronous>, transform_indices = @transform_4, window_bounds = array<i64: 128, 128>}, {pipeline_mode = #tpu.pipeline_mode<synchronous>, transform_indices = @transform_5, window_bounds = array<i64: 1, 128>}, {pipeline_mode = #tpu.pipeline_mode<synchronous>, transform_indices = @transform_6, window_bounds = array<i64: 128, 128>}, {pipeline_mode = #tpu.pipeline_mode<synchronous>, transform_indices = @transform_7, window_bounds = array<i64: 1, 128>}, {transform_indices = @transform_8, window_bounds = array<i64: 1>}, {transform_indices = @transform_9, window_bounds = array<i64: 1>}, {transform_indices = @transform_10, window_bounds = array<i64: 1, 8, 128>}]} {
    %c0 = arith.constant 0 : index
    %0 = memref.load %arg9[%c0] : memref<1xf32, #tpu.memory_space<smem>>
    %c0_0 = arith.constant 0 : index
    %1 = memref.load %arg10[%c0_0] : memref<1xf32, #tpu.memory_space<smem>>
    %c0_1 = arith.constant 0 : index
    %c0_2 = arith.constant 0 : index
    %c0_3 = arith.constant 0 : index
    %2 = vector.load %arg3[%c0_1, %c0_2, %c0_3] : memref<1x128x128xbf16, #tpu.memory_space<vmem>>, vector<1x128x128xbf16>
    %3 = vector.shape_cast %2 : vector<1x128x128xbf16> to vector<128x128xbf16>
    %c0_4 = arith.constant 0 : index
    %c0_5 = arith.constant 0 : index
    %c0_6 = arith.constant 0 : index
    %4 = vector.load %arg1[%c0_4, %c0_5, %c0_6] : memref<1x128x1xf32, #tpu.memory_space<vmem>>, vector<1x128x1xf32>
    %5 = vector.shape_cast %4 : vector<1x128x1xf32> to vector<128x1xf32>
    %6 = vector.shape_cast %5 : vector<128x1xf32> to vector<8x16x1xf32>
    %c0_7 = arith.constant 0 : index
    %c0_8 = arith.constant 0 : index
    %c0_9 = arith.constant 0 : index
    %7 = vector.load %arg2[%c0_7, %c0_8, %c0_9] : memref<1x128x128xbf16, #tpu.memory_space<vmem>>, vector<1x128x128xbf16>
    %8 = vector.shape_cast %7 : vector<1x128x128xbf16> to vector<128x128xbf16>
    %cst = arith.constant dense<0.000000e+00> : vector<128x128xf32>
    %9 = tpu.matmul %3, %8, %cst {dimension_numbers = #tpu.dot_dimension_numbers<[1], [0], [0], [1], [0, 0, 1, 1], [], []>} : vector<128x128xbf16>, vector<128x128xbf16>, vector<128x128xf32> -> vector<128x128xf32>
    %c0_10 = arith.constant 0 : index
    %c0_11 = arith.constant 0 : index
    %10 = vector.load %arg4[%c0_10, %c0_11] : memref<1x128xf32, #tpu.memory_space<vmem>>, vector<1x128xf32>
    %11 = vector.broadcast %10 : vector<1x128xf32> to vector<128x128xf32>
    %12 = arith.addf %9, %11 : vector<128x128xf32>
    %13 = vector.shape_cast %12 : vector<128x128xf32> to vector<8x16x128xf32>
    %14 = vector.broadcast %6 : vector<8x16x1xf32> to vector<8x16x128xf32>
    %15 = arith.mulf %13, %14 : vector<8x16x128xf32>
    %cst_12 = arith.constant dense<0.000000e+00> : vector<8x128xf32>
    %16 = vector.multi_reduction <add>, %15, %cst_12 [1] : vector<8x16x128xf32> to vector<8x128xf32>
    %17 = vector.shape_cast %16 : vector<8x128xf32> to vector<8x1x128xf32>
    %18 = arith.mulf %15, %13 : vector<8x16x128xf32>
    %cst_13 = arith.constant dense<0.000000e+00> : vector<8x128xf32>
    %19 = vector.multi_reduction <add>, %18, %cst_13 [1] : vector<8x16x128xf32> to vector<8x128xf32>
    %20 = vector.shape_cast %19 : vector<8x128xf32> to vector<8x1x128xf32>
    %21 = arith.mulf %17, %17 : vector<8x1x128xf32>
    %22 = arith.subf %20, %21 : vector<8x1x128xf32>
    %cst_14 = arith.constant 0.000000e+00 : f32
    %23 = vector.broadcast %cst_14 : f32 to vector<8x1x128xf32>
    %24 = arith.maximumf %22, %23 : vector<8x1x128xf32>
    %cst_15 = arith.constant 9.99999974E-6 : f32
    %25 = vector.broadcast %cst_15 : f32 to vector<8x1x128xf32>
    %26 = arith.addf %24, %25 : vector<8x1x128xf32>
    %27 = math.rsqrt %26 : vector<8x1x128xf32>
    %28 = vector.broadcast %0 : f32 to vector<8x1x128xf32>
    %29 = arith.mulf %27, %28 : vector<8x1x128xf32>
    %30 = vector.broadcast %29 : vector<8x1x128xf32> to vector<8x16x128xf32>
    %31 = arith.mulf %13, %30 : vector<8x16x128xf32>
    %32 = arith.mulf %17, %29 : vector<8x1x128xf32>
    %33 = vector.broadcast %1 : f32 to vector<8x1x128xf32>
    %34 = arith.subf %33, %32 : vector<8x1x128xf32>
    %35 = vector.broadcast %34 : vector<8x1x128xf32> to vector<8x16x128xf32>
    %36 = arith.addf %31, %35 : vector<8x16x128xf32>
    %cst_16 = arith.constant 0.000000e+00 : f32
    %37 = vector.broadcast %cst_16 : f32 to vector<8x16x128xf32>
    %38 = arith.maximumf %36, %37 : vector<8x16x128xf32>
    %39 = vector.shape_cast %38 : vector<8x16x128xf32> to vector<128x128xf32>
    %40 = arith.truncf %39 : vector<128x128xf32> to vector<128x128xbf16>
    %c0_17 = arith.constant 0 : index
    %c0_18 = arith.constant 0 : index
    %41 = vector.load %arg5[%c0_17, %c0_18] : memref<128x128xbf16, #tpu.memory_space<vmem>>, vector<128x128xbf16>
    %cst_19 = arith.constant dense<0.000000e+00> : vector<128x128xf32>
    %42 = tpu.matmul %40, %41, %cst_19 {dimension_numbers = #tpu.dot_dimension_numbers<[1], [0], [0], [1], [0, 0, 1, 1], [], []>} : vector<128x128xbf16>, vector<128x128xbf16>, vector<128x128xf32> -> vector<128x128xf32>
    %43 = arith.truncf %42 : vector<128x128xf32> to vector<128x128xbf16>
    %cst_20 = arith.constant dense<0.000000e+00> : vector<128x128xf32>
    %44 = tpu.matmul %3, %43, %cst_20 {dimension_numbers = #tpu.dot_dimension_numbers<[1], [0], [0], [1], [0, 0, 1, 1], [], []>} : vector<128x128xbf16>, vector<128x128xbf16>, vector<128x128xf32> -> vector<128x128xf32>
    %c0_21 = arith.constant 0 : index
    %c0_22 = arith.constant 0 : index
    %45 = vector.load %arg6[%c0_21, %c0_22] : memref<1x128xf32, #tpu.memory_space<vmem>>, vector<1x128xf32>
    %46 = vector.broadcast %45 : vector<1x128xf32> to vector<128x128xf32>
    %47 = arith.addf %44, %46 : vector<128x128xf32>
    %48 = vector.shape_cast %47 : vector<128x128xf32> to vector<8x16x128xf32>
    %49 = vector.broadcast %6 : vector<8x16x1xf32> to vector<8x16x128xf32>
    %50 = arith.mulf %48, %49 : vector<8x16x128xf32>
    %cst_23 = arith.constant dense<0.000000e+00> : vector<8x128xf32>
    %51 = vector.multi_reduction <add>, %50, %cst_23 [1] : vector<8x16x128xf32> to vector<8x128xf32>
    %52 = vector.shape_cast %51 : vector<8x128xf32> to vector<8x1x128xf32>
    %53 = arith.mulf %50, %48 : vector<8x16x128xf32>
    %cst_24 = arith.constant dense<0.000000e+00> : vector<8x128xf32>
    %54 = vector.multi_reduction <add>, %53, %cst_24 [1] : vector<8x16x128xf32> to vector<8x128xf32>
    %55 = vector.shape_cast %54 : vector<8x128xf32> to vector<8x1x128xf32>
    %56 = arith.mulf %52, %52 : vector<8x1x128xf32>
    %57 = arith.subf %55, %56 : vector<8x1x128xf32>
    %cst_25 = arith.constant 0.000000e+00 : f32
    %58 = vector.broadcast %cst_25 : f32 to vector<8x1x128xf32>
    %59 = arith.maximumf %57, %58 : vector<8x1x128xf32>
    %cst_26 = arith.constant 9.99999974E-6 : f32
    %60 = vector.broadcast %cst_26 : f32 to vector<8x1x128xf32>
    %61 = arith.addf %59, %60 : vector<8x1x128xf32>
    %62 = math.rsqrt %61 : vector<8x1x128xf32>
    %63 = vector.broadcast %0 : f32 to vector<8x1x128xf32>
    %64 = arith.mulf %62, %63 : vector<8x1x128xf32>
    %65 = vector.broadcast %64 : vector<8x1x128xf32> to vector<8x16x128xf32>
    %66 = arith.mulf %48, %65 : vector<8x16x128xf32>
    %67 = arith.mulf %52, %64 : vector<8x1x128xf32>
    %68 = vector.broadcast %1 : f32 to vector<8x1x128xf32>
    %69 = arith.subf %68, %67 : vector<8x1x128xf32>
    %70 = vector.broadcast %69 : vector<8x1x128xf32> to vector<8x16x128xf32>
    %71 = arith.addf %66, %70 : vector<8x16x128xf32>
    %cst_27 = arith.constant 0.000000e+00 : f32
    %72 = vector.broadcast %cst_27 : f32 to vector<8x16x128xf32>
    %73 = arith.maximumf %71, %72 : vector<8x16x128xf32>
    %74 = vector.shape_cast %73 : vector<8x16x128xf32> to vector<128x128xf32>
    %75 = arith.truncf %74 : vector<128x128xf32> to vector<128x128xbf16>
    %c0_28 = arith.constant 0 : index
    %c0_29 = arith.constant 0 : index
    %76 = vector.load %arg7[%c0_28, %c0_29] : memref<128x128xbf16, #tpu.memory_space<vmem>>, vector<128x128xbf16>
    %cst_30 = arith.constant dense<0.000000e+00> : vector<128x128xf32>
    %77 = tpu.matmul %75, %76, %cst_30 {dimension_numbers = #tpu.dot_dimension_numbers<[1], [0], [0], [1], [0, 0, 1, 1], [], []>} : vector<128x128xbf16>, vector<128x128xbf16>, vector<128x128xf32> -> vector<128x128xf32>
    %78 = arith.truncf %77 : vector<128x128xf32> to vector<128x128xbf16>
    %cst_31 = arith.constant dense<0.000000e+00> : vector<128x128xf32>
    %79 = tpu.matmul %3, %78, %cst_31 {dimension_numbers = #tpu.dot_dimension_numbers<[1], [0], [0], [1], [0, 0, 1, 1], [], []>} : vector<128x128xbf16>, vector<128x128xbf16>, vector<128x128xf32> -> vector<128x128xf32>
    %c0_32 = arith.constant 0 : index
    %c0_33 = arith.constant 0 : index
    %80 = vector.load %arg8[%c0_32, %c0_33] : memref<1x128xf32, #tpu.memory_space<vmem>>, vector<1x128xf32>
    %81 = vector.broadcast %80 : vector<1x128xf32> to vector<128x128xf32>
    %82 = arith.addf %79, %81 : vector<128x128xf32>
    %83 = vector.shape_cast %82 : vector<128x128xf32> to vector<8x16x128xf32>
    %84 = vector.broadcast %6 : vector<8x16x1xf32> to vector<8x16x128xf32>
    %85 = arith.mulf %83, %84 : vector<8x16x128xf32>
    %cst_34 = arith.constant dense<0.000000e+00> : vector<8x128xf32>
    %86 = vector.multi_reduction <add>, %85, %cst_34 [1] : vector<8x16x128xf32> to vector<8x128xf32>
    %87 = vector.shape_cast %86 : vector<8x128xf32> to vector<8x1x128xf32>
    %88 = arith.mulf %85, %83 : vector<8x16x128xf32>
    %cst_35 = arith.constant dense<0.000000e+00> : vector<8x128xf32>
    %89 = vector.multi_reduction <add>, %88, %cst_35 [1] : vector<8x16x128xf32> to vector<8x128xf32>
    %90 = vector.shape_cast %89 : vector<8x128xf32> to vector<8x1x128xf32>
    %91 = arith.mulf %87, %87 : vector<8x1x128xf32>
    %92 = arith.subf %90, %91 : vector<8x1x128xf32>
    %cst_36 = arith.constant 0.000000e+00 : f32
    %93 = vector.broadcast %cst_36 : f32 to vector<8x1x128xf32>
    %94 = arith.maximumf %92, %93 : vector<8x1x128xf32>
    %cst_37 = arith.constant 9.99999974E-6 : f32
    %95 = vector.broadcast %cst_37 : f32 to vector<8x1x128xf32>
    %96 = arith.addf %94, %95 : vector<8x1x128xf32>
    %97 = math.rsqrt %96 : vector<8x1x128xf32>
    %98 = vector.broadcast %0 : f32 to vector<8x1x128xf32>
    %99 = arith.mulf %97, %98 : vector<8x1x128xf32>
    %100 = vector.broadcast %99 : vector<8x1x128xf32> to vector<8x16x128xf32>
    %101 = arith.mulf %83, %100 : vector<8x16x128xf32>
    %102 = arith.mulf %87, %99 : vector<8x1x128xf32>
    %103 = vector.broadcast %1 : f32 to vector<8x1x128xf32>
    %104 = arith.subf %103, %102 : vector<8x1x128xf32>
    %105 = vector.broadcast %104 : vector<8x1x128xf32> to vector<8x16x128xf32>
    %106 = arith.addf %101, %105 : vector<8x16x128xf32>
    %cst_38 = arith.constant 0.000000e+00 : f32
    %107 = vector.broadcast %cst_38 : f32 to vector<8x16x128xf32>
    %108 = arith.maximumf %106, %107 : vector<8x16x128xf32>
    %109 = vector.shape_cast %108 : vector<8x16x128xf32> to vector<128x128xf32>
    %110 = arith.truncf %109 : vector<128x128xf32> to vector<128x128xbf16>
    %111 = arith.extf %110 : vector<128x128xbf16> to vector<128x128xf32>
    %112 = vector.shape_cast %111 : vector<128x128xf32> to vector<8x16x128xf32>
    %113 = vector.broadcast %6 : vector<8x16x1xf32> to vector<8x16x128xf32>
    %114 = arith.mulf %112, %113 : vector<8x16x128xf32>
    %cst_39 = arith.constant dense<0.000000e+00> : vector<8x128xf32>
    %115 = vector.multi_reduction <add>, %114, %cst_39 [1] : vector<8x16x128xf32> to vector<8x128xf32>
    %c0_40 = arith.constant 0 : index
    %c0_41 = arith.constant 0 : index
    %c0_42 = arith.constant 0 : index
    %116 = vector.load %arg11[%c0_40, %c0_41, %c0_42] : memref<1x8x128xf32, #tpu.memory_space<vmem>>, vector<1x8x128xf32>
    %117 = vector.shape_cast %116 : vector<1x8x128xf32> to vector<8x128xf32>
    %118 = vector.shape_cast %115 : vector<8x128xf32> to vector<1x8x128xf32>
    tpu.vector_store %arg11[%c0_40, %c0_41, %c0_42], %118 {strides = array<i32>} : memref<1x8x128xf32, #tpu.memory_space<vmem>>, vector<1x8x128xf32>,
    return
  }
  func.func @transform_0(%arg0: i32) -> (i32, i32, i32) {
    %c0_i32 = arith.constant 0 : i32
    %c0_i32_0 = arith.constant 0 : i32
    %c0_i32_1 = arith.constant 0 : i32
    return %arg0, %c0_i32, %c0_i32_0 : i32, i32, i32
  }
  func.func @transform_1(%arg0: i32) -> (i32, i32, i32) {
    %c0_i32 = arith.constant 0 : i32
    %c0_i32_0 = arith.constant 0 : i32
    %c0_i32_1 = arith.constant 0 : i32
    return %arg0, %c0_i32, %c0_i32_0 : i32, i32, i32
  }
  func.func @transform_2(%arg0: i32) -> (i32, i32, i32) {
    %c0_i32 = arith.constant 0 : i32
    %c0_i32_0 = arith.constant 0 : i32
    %c0_i32_1 = arith.constant 0 : i32
    return %arg0, %c0_i32, %c0_i32_0 : i32, i32, i32
  }
  func.func @transform_3(%arg0: i32) -> (i32, i32) {
    %c0_i32 = arith.constant 0 : i32
    %c0_i32_0 = arith.constant 0 : i32
    %c0_i32_1 = arith.constant 0 : i32
    return %c0_i32, %c0_i32_0 : i32, i32
  }
  func.func @transform_4(%arg0: i32) -> (i32, i32) {
    %c0_i32 = arith.constant 0 : i32
    %c0_i32_0 = arith.constant 0 : i32
    %c0_i32_1 = arith.constant 0 : i32
    return %c0_i32, %c0_i32_0 : i32, i32
  }
  func.func @transform_5(%arg0: i32) -> (i32, i32) {
    %c0_i32 = arith.constant 0 : i32
    %c0_i32_0 = arith.constant 0 : i32
    %c0_i32_1 = arith.constant 0 : i32
    return %c0_i32, %c0_i32_0 : i32, i32
  }
  func.func @transform_6(%arg0: i32) -> (i32, i32) {
    %c0_i32 = arith.constant 0 : i32
    %c0_i32_0 = arith.constant 0 : i32
    %c0_i32_1 = arith.constant 0 : i32
    return %c0_i32, %c0_i32_0 : i32, i32
  }
  func.func @transform_7(%arg0: i32) -> (i32, i32) {
    %c0_i32 = arith.constant 0 : i32
    %c0_i32_0 = arith.constant 0 : i32
    %c0_i32_1 = arith.constant 0 : i32
    return %c0_i32, %c0_i32_0 : i32, i32
  }
  func.func @transform_8(%arg0: i32) -> i32 {
    %c0_i32 = arith.constant 0 : i32
    %c0_i32_0 = arith.constant 0 : i32
    return %c0_i32 : i32
  }
  func.func @transform_9(%arg0: i32) -> i32 {
    %c0_i32 = arith.constant 0 : i32
    %c0_i32_0 = arith.constant 0 : i32
    return %c0_i32 : i32
  }
  func.func @transform_10(%arg0: i32) -> (i32, i32, i32) {
    %c0_i32 = arith.constant 0 : i32
    %c0_i32_0 = arith.constant 0 : i32
    %c0_i32_1 = arith.constant 0 : i32
    return %arg0, %c0_i32, %c0_i32_0 : i32, i32, i32
  }
}

</mosaic_0001>

<llo_original>
// kernel: tpu_custom_call.1
$region0: #{tpu_custom_call.1}
  #allocation0 [shape = 'u32[]', space=smem, size = 0x4, offset = 0x4, fixed_abs, tag = 'smem constant byte address 0x4 - core index']
  #allocation1 [shape = 'u32[144,128]{1,0:T(1,128)}', space=vmem, size = 0x12000, scoped, tag = 'internal scratch']
  #allocation2 [shape = 'f32[1]{0:T(128)S(6)}', space=smem, size = 0x200, scoped, tag = 'scoped memory for tpu_custom_call.1']
  #allocation3 [shape = 'f32[1]{0:T(128)S(6)}', space=smem, size = 0x200, scoped, tag = 'scoped memory for tpu_custom_call.1']
  %s0 = inlined_call_operand.vmem [shape: f32[1,128,1], index: 0, kind: input, shape index: {}]
  %s1 = inlined_call_operand.vmem [shape: bf16[1,128,128], index: 1, kind: input, shape index: {}]
  %s2 = inlined_call_operand.vmem [shape: bf16[1,128,128], index: 2, kind: input, shape index: {}]
  %s3 = inlined_call_operand.vmem [shape: f32[1,128], index: 3, kind: input, shape index: {}]
  %s4 = inlined_call_operand.hbm [shape: bf16[128,128], index: 4, kind: input, shape index: {}]
  %s5 = inlined_call_operand.vmem [shape: f32[1,128], index: 5, kind: input, shape index: {}]
  %s6 = inlined_call_operand.hbm [shape: bf16[128,128], index: 6, kind: input, shape index: {}]
  %s7 = inlined_call_operand.vmem [shape: f32[1,128], index: 7, kind: input, shape index: {}]
  %s8 = inlined_call_operand.<no memory space> [shape: f32[1], index: 8, kind: input, shape index: {}]
  %s9 = inlined_call_operand.<no memory space> [shape: f32[1], index: 9, kind: input, shape index: {}]
  %s10 = inlined_call_operand.hbm [shape: f32[1,8,128], index: 10, kind: output, shape index: {}]
  %s11 = sld [smem:[#allocation0]]
  $region58: #{tpu_custom_call.1} parent=0
    _
  %s13 = ssub.s32 1, %s11
  %s14 = scalar_select 0, %s13, %s11
  %15 = sst [smem:[#allocation2]] %s8
  %16 = sst [smem:[#allocation3]] %s9
  $region1: #{tpu_custom_call.1} parent=0
    #allocation4 [shape = 'u8[32768]{0}', space=vmem, size = 0x8000, scoped, tag = 'input window, operand 4, single buffered']
    #allocation5 [shape = 's32[1]{0}', space=sflag, size = 0x4, scoped, tag = 'scoped memory for tpu_custom_call.1']
    #allocation6 [shape = 's32[1]{0}', space=sflag, size = 0x4, scoped, tag = 'scoped memory for tpu_custom_call.1']
    #allocation7 [shape = 'u8[32768]{0}', space=vmem, size = 0x8000, scoped, tag = 'input window, operand 6, single buffered']
    #allocation8 [shape = 's32[1]{0}', space=sflag, size = 0x4, scoped, tag = 'scoped memory for tpu_custom_call.1']
    #allocation9 [shape = 'u8[4096]{0}', space=vmem, size = 0x1000, scoped, tag = 'output window, operand 0, single buffered']
    %17 = vsyncpa [#allocation5], 0
    %18 = vsyncpa [#allocation8], 0
    %19 = vsyncpa [#allocation6], 0
    // Predicated region
    $region2: #{tpu_custom_call.1} parent=1 // pred_check
      _
    $region3: #{tpu_custom_call.1} parent=1 // pred_check_branch
      %21 = sbr.rel (0) target = $region5
    $region4: #{tpu_custom_call.1} parent=1 // pred_region
      _
    $region5: #{tpu_custom_call.1} parent=1 // pred_fallthru
      _
    // Predicated region
    $region6: #{tpu_custom_call.1} parent=1 // pred_check
      _
    $region7: #{tpu_custom_call.1} parent=1 // pred_check_branch
      %23 = sbr.rel (0) target = $region9
    $region8: #{tpu_custom_call.1} parent=1 // pred_region
      _
    $region9: #{tpu_custom_call.1} parent=1 // pred_fallthru
      _
    // Predicated region
    $region10: #{tpu_custom_call.1} parent=1 // pred_check
      _
    $region11: #{tpu_custom_call.1} parent=1 // pred_check_branch
      %25 = sbr.rel (0) target = $region13
    $region12: #{tpu_custom_call.1} parent=1 // pred_region
      _
    $region13: #{tpu_custom_call.1} parent=1 // pred_fallthru
      _
    // Predicated region
    $region14: #{tpu_custom_call.1} parent=1 // pred_check
      _
    $region15: #{tpu_custom_call.1} parent=1 // pred_check_branch
      %27 = sbr.rel (0) target = $region17
    $region16: #{tpu_custom_call.1} parent=1 // pred_region
      _
    $region17: #{tpu_custom_call.1} parent=1 // pred_fallthru
      _
    // Predicated region
    $region18: #{tpu_custom_call.1} parent=1 // pred_check
      _
    $region19: #{tpu_custom_call.1} parent=1 // pred_check_branch
      %29 = sbr.rel (0) target = $region21
    $region20: #{tpu_custom_call.1} parent=1 // pred_region
      %s31 = ssub.s32 1024, 1024
      %32 = vsyncadd [#allocation5], %s31
      %s33 = sshll.u32 [#allocation4], 4
      %s34 = int_to_ptr.vmem [resolvable:$true] %s33
      %39 = dma.hbm_to_vmem [thread:$0]  %s4, 1024, %s34, [#allocation5], 64, 64, 4
    $region21: #{tpu_custom_call.1} parent=1 // pred_fallthru
      _
    // Predicated region
    $region22: #{tpu_custom_call.1} parent=1 // pred_check
      _
    $region23: #{tpu_custom_call.1} parent=1 // pred_check_branch
      %41 = sbr.rel (0) target = $region25
    $region24: #{tpu_custom_call.1} parent=1 // pred_region
      _
    $region25: #{tpu_custom_call.1} parent=1 // pred_fallthru
      _
    // Predicated region
    $region26: #{tpu_custom_call.1} parent=1 // pred_check
      _
    $region27: #{tpu_custom_call.1} parent=1 // pred_check_branch
      %43 = sbr.rel (0) target = $region29
    $region28: #{tpu_custom_call.1} parent=1 // pred_region
      %s45 = ssub.s32 1024, 1024
      %46 = vsyncadd [#allocation8], %s45
      %s47 = sshll.u32 [#allocation7], 4
      %s48 = int_to_ptr.vmem [resolvable:$true] %s47
      %53 = dma.hbm_to_vmem [thread:$0]  %s6, 1024, %s48, [#allocation8], 64, 64, 4
    $region29: #{tpu_custom_call.1} parent=1 // pred_fallthru
      _
    // Predicated region
    $region30: #{tpu_custom_call.1} parent=1 // pred_check
      _
    $region31: #{tpu_custom_call.1} parent=1 // pred_check_branch
      %55 = sbr.rel (0) target = $region33
    $region32: #{tpu_custom_call.1} parent=1 // pred_region
      _
    $region33: #{tpu_custom_call.1} parent=1 // pred_fallthru
      _
    // Predicated region
    $region34: #{tpu_custom_call.1} parent=1 // pred_check
      _
    $region35: #{tpu_custom_call.1} parent=1 // pred_check_branch
      %57 = sbr.rel (0) target = $region37
    $region36: #{tpu_custom_call.1} parent=1 // pred_region
      _
    $region37: #{tpu_custom_call.1} parent=1 // pred_fallthru
      _
    // Predicated region
    $region38: #{tpu_custom_call.1} parent=1 // pred_check
      _
    $region39: #{tpu_custom_call.1} parent=1 // pred_check_branch
      %59 = sbr.rel (0) target = $region41
    $region40: #{tpu_custom_call.1} parent=1 // pred_region
      _
    $region41: #{tpu_custom_call.1} parent=1 // pred_fallthru
      _
    // Predicated region
    $region42: #{tpu_custom_call.1} parent=1 // pred_check
      _
    $region43: #{tpu_custom_call.1} parent=1 // pred_check_branch
      %61 = sbr.rel (0) target = $region45
    $region44: #{tpu_custom_call.1} parent=1 // pred_region
      %62 = dma.done [#allocation5], 1024
    $region45: #{tpu_custom_call.1} parent=1 // pred_fallthru
      _
    // Predicated region
    $region46: #{tpu_custom_call.1} parent=1 // pred_check
      _
    $region47: #{tpu_custom_call.1} parent=1 // pred_check_branch
      %64 = sbr.rel (0) target = $region49
    $region48: #{tpu_custom_call.1} parent=1 // pred_region
      %65 = dma.done [#allocation8], 1024
    $region49: #{tpu_custom_call.1} parent=1 // pred_fallthru
      _
    %s67 = sld [smem:[#allocation2]]
    %s68 = sld [smem:[#allocation3]]
    %v69 = vld [vmem:[%s2] sm:$0xf]
    %v70 = vld [vmem:[%s2 + $0x4] sm:$0xf]
    %v71 = vld [vmem:[%s2 + $0x8] sm:$0xf]
    %v72 = vld [vmem:[%s2 + $0xc] sm:$0xf]
    %v73 = vld [vmem:[%s2 + $0x10] sm:$0xf]
    %v74 = vld [vmem:[%s2 + $0x14] sm:$0xf]
    %v75 = vld [vmem:[%s2 + $0x18] sm:$0xf]
    %v76 = vld [vmem:[%s2 + $0x1c] sm:$0xf]
    %v77 = vld [vmem:[%s2 + $0x20] sm:$0xf]
    %v78 = vld [vmem:[%s2 + $0x24] sm:$0xf]
    %v79 = vld [vmem:[%s2 + $0x28] sm:$0xf]
    %v80 = vld [vmem:[%s2 + $0x2c] sm:$0xf]
    %v81 = vld [vmem:[%s2 + $0x30] sm:$0xf]
    %v82 = vld [vmem:[%s2 + $0x34] sm:$0xf]
    %v83 = vld [vmem:[%s2 + $0x38] sm:$0xf]
    %v84 = vld [vmem:[%s2 + $0x3c] sm:$0xf]
    %v85 = vld [vmem:[%s0] sm:$0xff]
    %v86 = vld [vmem:[%s0 + $0x8] sm:$0xff]
    %v87 = vld [vmem:[%s0 + $0x10] sm:$0xff]
    %v88 = vld [vmem:[%s0 + $0x18] sm:$0xff]
    %v89 = vld [vmem:[%s0 + $0x20] sm:$0xff]
    %v90 = vld [vmem:[%s0 + $0x28] sm:$0xff]
    %v91 = vld [vmem:[%s0 + $0x30] sm:$0xff]
    %v92 = vld [vmem:[%s0 + $0x38] sm:$0xff]
    %v93 = vld [vmem:[%s0 + $0x40] sm:$0xff]
    %v94 = vld [vmem:[%s0 + $0x48] sm:$0xff]
    %v95 = vld [vmem:[%s0 + $0x50] sm:$0xff]
    %v96 = vld [vmem:[%s0 + $0x58] sm:$0xff]
    %v97 = vld [vmem:[%s0 + $0x60] sm:$0xff]
    %v98 = vld [vmem:[%s0 + $0x68] sm:$0xff]
    %v99 = vld [vmem:[%s0 + $0x70] sm:$0xff]
    %v100 = vld [vmem:[%s0 + $0x78] sm:$0xff]
    %v101 = vld [vmem:[%s1] sm:$0xf]
    %v102 = vld [vmem:[%s1 + $0x4] sm:$0xf]
    %v103 = vld [vmem:[%s1 + $0x8] sm:$0xf]
    %v104 = vld [vmem:[%s1 + $0xc] sm:$0xf]
    %v105 = vld [vmem:[%s1 + $0x10] sm:$0xf]
    %v106 = vld [vmem:[%s1 + $0x14] sm:$0xf]
    %v107 = vld [vmem:[%s1 + $0x18] sm:$0xf]
    %v108 = vld [vmem:[%s1 + $0x1c] sm:$0xf]
    %v109 = vld [vmem:[%s1 + $0x20] sm:$0xf]
    %v110 = vld [vmem:[%s1 + $0x24] sm:$0xf]
    %v111 = vld [vmem:[%s1 + $0x28] sm:$0xf]
    %v112 = vld [vmem:[%s1 + $0x2c] sm:$0xf]
    %v113 = vld [vmem:[%s1 + $0x30] sm:$0xf]
    %v114 = vld [vmem:[%s1 + $0x34] sm:$0xf]
    %v115 = vld [vmem:[%s1 + $0x38] sm:$0xf]
    %v116 = vld [vmem:[%s1 + $0x3c] sm:$0xf]
    %v117 = vld [vmem:[%s3] sm:$0x1]
    %v119 = vlaneseq
    %v120 = vshrl.u32 %v119, 7
    %v121 = vsub.s32 0, %v120
    %v122 = vrot.slane %v117, %v121
    %v140 = vunpack.c.l.b16 %v69
    %v141 = vunpack.c.l.b16 %v70
    %v142 = vunpack.c.l.b16 %v71
    %v143 = vunpack.c.l.b16 %v72
    %v144 = vunpack.c.l.b16 %v73
    %v145 = vunpack.c.l.b16 %v74
    %v146 = vunpack.c.l.b16 %v75
    %v147 = vunpack.c.l.b16 %v76
    %v148 = vunpack.c.l.b16 %v77
    %v149 = vunpack.c.l.b16 %v78
    %v150 = vunpack.c.l.b16 %v79
    %v151 = vunpack.c.l.b16 %v80
    %v152 = vunpack.c.l.b16 %v81
    %v153 = vunpack.c.l.b16 %v82
    %v154 = vunpack.c.l.b16 %v83
    %v155 = vunpack.c.l.b16 %v84
    %v156 = vpack.c.b16 %v141, %v140
    %v157 = vpack.c.b16 %v143, %v142
    %v158 = vpack.c.b16 %v145, %v144
    %v159 = vpack.c.b16 %v147, %v146
    %v160 = vpack.c.b16 %v149, %v148
    %v161 = vpack.c.b16 %v151, %v150
    %v162 = vpack.c.b16 %v153, %v152
    %v163 = vpack.c.b16 %v155, %v154
    %v188 = vunpack.c.l.b16 %v101
    %v189 = vunpack.c.l.b16 %v102
    %v190 = vunpack.c.l.b16 %v103
    %v191 = vunpack.c.l.b16 %v104
    %v192 = vunpack.c.l.b16 %v105
    %v193 = vunpack.c.l.b16 %v106
    %v194 = vunpack.c.l.b16 %v107
    %v195 = vunpack.c.l.b16 %v108
    %v196 = vunpack.c.l.b16 %v109
    %v197 = vunpack.c.l.b16 %v110
    %v198 = vunpack.c.l.b16 %v111
    %v199 = vunpack.c.l.b16 %v112
    %v200 = vunpack.c.l.b16 %v113
    %v201 = vunpack.c.l.b16 %v114
    %v202 = vunpack.c.l.b16 %v115
    %v203 = vunpack.c.l.b16 %v116
    %v204 = vpack.c.b16 %v189, %v188
    %v205 = vpack.c.b16 %v191, %v190
    %v206 = vpack.c.b16 %v193, %v192
    %v207 = vpack.c.b16 %v195, %v194
    %v208 = vpack.c.b16 %v197, %v196
    %v209 = vpack.c.b16 %v199, %v198
    %v210 = vpack.c.b16 %v201, %v200
    %v211 = vpack.c.b16 %v203, %v202
    %220 = vmatprep.subr.bf16.mxu0 0
    %221 = vmatpush1.bf16.msra.mxu0 %v211
    %222 = vmatprep.subr.bf16.mxu0 0
    %223 = vmatpush1.bf16.msra.mxu0 %v210
    %224 = vmatprep.subr.bf16.mxu0 0
    %225 = vmatpush1.bf16.msra.mxu0 %v209
    %226 = vmatprep.subr.bf16.mxu0 0
    %227 = vmatpush1.bf16.msra.mxu0 %v208
    %228 = vmatprep.subr.bf16.mxu0 0
    %229 = vmatpush1.bf16.msra.mxu0 %v207
    %230 = vmatprep.subr.bf16.mxu0 0
    %231 = vmatpush1.bf16.msra.mxu0 %v206
    %232 = vmatprep.subr.bf16.mxu0 0
    %233 = vmatpush1.bf16.msra.mxu0 %v205
    %234 = vmatprep.subr.bf16.mxu0 0
    %235 = vmatpush1.bf16.msra.mxu0 %v204
    %236 = vmatprep.subr.bf16.mxu0 0
    %237 = vmatpush2.bf16.msra.mxu0 0
    %238 = vmatprep.subr.bf16.mxu0 0
    %239 = vmatpush2.bf16.msra.mxu0 0
    %240 = vmatprep.subr.bf16.mxu0 0
    %241 = vmatpush2.bf16.msra.mxu0 0
    %242 = vmatprep.subr.bf16.mxu0 0
    %243 = vmatpush2.bf16.msra.mxu0 0
    %244 = vmatprep.subr.bf16.mxu0 0
    %245 = vmatpush2.bf16.msra.mxu0 0
    %246 = vmatprep.subr.bf16.mxu0 0
    %247 = vmatpush2.bf16.msra.mxu0 0
    %248 = vmatprep.subr.bf16.mxu0 0
    %249 = vmatpush2.bf16.msra.mxu0 0
    %250 = vmatprep.subr.bf16.mxu0 0
    %251 = vmatpush2.bf16.msra.mxu0 0
    %252 = vmatprep.mubr.bf16.mxu0 0
    %253 = vmatmul.mubr.bf16.gmra.mxu0 %v156
    %v254 = vpop.f32.mrf.mxu0
    %v255 = vadd.f32 %v122, %v254
    %v256 = vpop.f32.mrf.mxu0
    %v257 = vpop.f32.mrf.mxu0
    %v258 = vadd.f32 %v122, %v257
    %v259 = vpop.f32.mrf.mxu0
    %260 = vmatprep.mubr.bf16.mxu0 0
    %261 = vmatmul.mubr.bf16.gmra.mxu0 %v157
    %v262 = vpop.f32.mrf.mxu0
    %v263 = vadd.f32 %v122, %v262
    %v264 = vpop.f32.mrf.mxu0
    %v265 = vpop.f32.mrf.mxu0
    %v266 = vadd.f32 %v122, %v265
    %v267 = vpop.f32.mrf.mxu0
    %268 = vmatprep.mubr.bf16.mxu0 0
    %269 = vmatmul.mubr.bf16.gmra.mxu0 %v158
    %v270 = vpop.f32.mrf.mxu0
    %v271 = vadd.f32 %v122, %v270
    %v272 = vpop.f32.mrf.mxu0
    %v273 = vpop.f32.mrf.mxu0
    %v274 = vadd.f32 %v122, %v273
    %v275 = vpop.f32.mrf.mxu0
    %276 = vmatprep.mubr.bf16.mxu0 0
    %277 = vmatmul.mubr.bf16.gmra.mxu0 %v159
    %v278 = vpop.f32.mrf.mxu0
    %v279 = vadd.f32 %v122, %v278
    %v280 = vpop.f32.mrf.mxu0
    %v281 = vpop.f32.mrf.mxu0
    %v282 = vadd.f32 %v122, %v281
    %v283 = vpop.f32.mrf.mxu0
    %284 = vmatprep.mubr.bf16.mxu0 0
    %285 = vmatmul.mubr.bf16.gmra.mxu0 %v160
    %v286 = vpop.f32.mrf.mxu0
    %v287 = vadd.f32 %v122, %v286
    %v288 = vpop.f32.mrf.mxu0
    %v289 = vpop.f32.mrf.mxu0
    %v290 = vadd.f32 %v122, %v289
    %v291 = vpop.f32.mrf.mxu0
    %292 = vmatprep.mubr.bf16.mxu0 0
    %293 = vmatmul.mubr.bf16.gmra.mxu0 %v161
    %v294 = vpop.f32.mrf.mxu0
    %v295 = vadd.f32 %v122, %v294
    %v296 = vpop.f32.mrf.mxu0
    %v297 = vpop.f32.mrf.mxu0
    %v298 = vadd.f32 %v122, %v297
    %v299 = vpop.f32.mrf.mxu0
    %300 = vmatprep.mubr.bf16.mxu0 0
    %301 = vmatmul.mubr.bf16.gmra.mxu0 %v162
    %v302 = vpop.f32.mrf.mxu0
    %v303 = vadd.f32 %v122, %v302
    %v304 = vpop.f32.mrf.mxu0
    %v305 = vpop.f32.mrf.mxu0
    %v306 = vadd.f32 %v122, %v305
    %v307 = vpop.f32.mrf.mxu0
    %308 = vmatprep.mubr.bf16.mxu0 0
    %309 = vmatmul.mubr.bf16.gmra.mxu0 %v163
    %v310 = vpop.f32.mrf.mxu0
    %v311 = vadd.f32 %v122, %v310
    %v312 = vpop.f32.mrf.mxu0
    %v313 = vpop.f32.mrf.mxu0
    %v314 = vadd.f32 %v122, %v313
    %v315 = vpop.f32.mrf.mxu0
    %316 = vdwg.mxu0
    %318 = vset.pattern.permute.xlu0 0
    %319 = vperm.xlu0 %318, %v85
    %v320 = vpop.permute.xlu0 %319
    %323 = vset.pattern.permute.xlu0 0
    %324 = vperm.xlu0 %323, %v86
    %v325 = vpop.permute.xlu0 %324
    %328 = vset.pattern.permute.xlu0 0
    %329 = vperm.xlu0 %328, %v87
    %v330 = vpop.permute.xlu0 %329
    %333 = vset.pattern.permute.xlu0 0
    %334 = vperm.xlu0 %333, %v88
    %v335 = vpop.permute.xlu0 %334
    %338 = vset.pattern.permute.xlu0 0
    %339 = vperm.xlu0 %338, %v89
    %v340 = vpop.permute.xlu0 %339
    %343 = vset.pattern.permute.xlu0 0
    %344 = vperm.xlu0 %343, %v90
    %v345 = vpop.permute.xlu0 %344
    %348 = vset.pattern.permute.xlu0 0
    %349 = vperm.xlu0 %348, %v91
    %v350 = vpop.permute.xlu0 %349
    %353 = vset.pattern.permute.xlu0 0
    %354 = vperm.xlu0 %353, %v92
    %v355 = vpop.permute.xlu0 %354
    %358 = vset.pattern.permute.xlu0 0
    %359 = vperm.xlu0 %358, %v93
    %v360 = vpop.permute.xlu0 %359
    %363 = vset.pattern.permute.xlu0 0
    %364 = vperm.xlu0 %363, %v94
    %v365 = vpop.permute.xlu0 %364
    %368 = vset.pattern.permute.xlu0 0
    %369 = vperm.xlu0 %368, %v95
    %v370 = vpop.permute.xlu0 %369
    %373 = vset.pattern.permute.xlu0 0
    %374 = vperm.xlu0 %373, %v96
    %v375 = vpop.permute.xlu0 %374
    %378 = vset.pattern.permute.xlu0 0
    %379 = vperm.xlu0 %378, %v97
    %v380 = vpop.permute.xlu0 %379
    %383 = vset.pattern.permute.xlu0 0
    %384 = vperm.xlu0 %383, %v98
    %v385 = vpop.permute.xlu0 %384
    %388 = vset.pattern.permute.xlu0 0
    %389 = vperm.xlu0 %388, %v99
    %v390 = vpop.permute.xlu0 %389
    %393 = vset.pattern.permute.xlu0 0
    %394 = vperm.xlu0 %393, %v100
    %v395 = vpop.permute.xlu0 %394
    %v397 = vmul.f32 %v255, %v320
    %v398 = vmul.f32 %v258, %v325
    %v399 = vmul.f32 %v263, %v330
    %v400 = vmul.f32 %v266, %v335
    %v401 = vmul.f32 %v271, %v340
    %v402 = vmul.f32 %v274, %v345
    %v403 = vmul.f32 %v279, %v350
    %v404 = vmul.f32 %v282, %v355
    %v405 = vmul.f32 %v287, %v360
    %v406 = vmul.f32 %v290, %v365
    %v407 = vmul.f32 %v295, %v370
    %v408 = vmul.f32 %v298, %v375
    %v409 = vmul.f32 %v303, %v380
    %v410 = vmul.f32 %v306, %v385
    %v411 = vmul.f32 %v311, %v390
    %v412 = vmul.f32 %v314, %v395
    %v413 = vadd.f32 %v397, %v398
    %v414 = vrot.slane %v413, 4
    %v415 = vadd.f32 %v413, %v414
    %v416 = vrot.slane %v415, 2
    %v417 = vadd.f32 %v415, %v416
    %v418 = vrot.slane %v417, 1
    %v419 = vadd.f32 %v417, %v418
    %v420 = vadd.f32 %v399, %v400
    %v421 = vrot.slane %v420, 4
    %v422 = vadd.f32 %v420, %v421
    %v423 = vrot.slane %v422, 2
    %v424 = vadd.f32 %v422, %v423
    %v425 = vrot.slane %v424, 1
    %v426 = vadd.f32 %v424, %v425
    %v427 = vadd.f32 %v401, %v402
    %v428 = vrot.slane %v427, 4
    %v429 = vadd.f32 %v427, %v428
    %v430 = vrot.slane %v429, 2
    %v431 = vadd.f32 %v429, %v430
    %v432 = vrot.slane %v431, 1
    %v433 = vadd.f32 %v431, %v432
    %v434 = vadd.f32 %v403, %v404
    %v435 = vrot.slane %v434, 4
    %v436 = vadd.f32 %v434, %v435
    %v437 = vrot.slane %v436, 2
    %v438 = vadd.f32 %v436, %v437
    %v439 = vrot.slane %v438, 1
    %v440 = vadd.f32 %v438, %v439
    %v441 = vadd.f32 %v405, %v406
    %v442 = vrot.slane %v441, 4
    %v443 = vadd.f32 %v441, %v442
    %v444 = vrot.slane %v443, 2
    %v445 = vadd.f32 %v443, %v444
    %v446 = vrot.slane %v445, 1
    %v447 = vadd.f32 %v445, %v446
    %v448 = vadd.f32 %v407, %v408
    %v449 = vrot.slane %v448, 4
    %v450 = vadd.f32 %v448, %v449
    %v451 = vrot.slane %v450, 2
    %v452 = vadd.f32 %v450, %v451
    %v453 = vrot.slane %v452, 1
    %v454 = vadd.f32 %v452, %v453
    %v455 = vadd.f32 %v409, %v410
    %v456 = vrot.slane %v455, 4
    %v457 = vadd.f32 %v455, %v456
    %v458 = vrot.slane %v457, 2
    %v459 = vadd.f32 %v457, %v458
    %v460 = vrot.slane %v459, 1
    %v461 = vadd.f32 %v459, %v460
    %v462 = vadd.f32 %v411, %v412
    %v463 = vrot.slane %v462, 4
    %v464 = vadd.f32 %v462, %v463
    %v465 = vrot.slane %v464, 2
    %v466 = vadd.f32 %v464, %v465
    %v467 = vrot.slane %v466, 1
    %v468 = vadd.f32 %v466, %v467
    %v469 = vmul.f32 %v397, %v255
    %v470 = vmul.f32 %v398, %v258
    %v471 = vmul.f32 %v399, %v263
    %v472 = vmul.f32 %v400, %v266
    %v473 = vmul.f32 %v401, %v271
    %v474 = vmul.f32 %v402, %v274
    %v475 = vmul.f32 %v403, %v279
    %v476 = vmul.f32 %v404, %v282
    %v477 = vmul.f32 %v405, %v287
    %v478 = vmul.f32 %v406, %v290
    %v479 = vmul.f32 %v407, %v295
    %v480 = vmul.f32 %v408, %v298
    %v481 = vmul.f32 %v409, %v303
    %v482 = vmul.f32 %v410, %v306
    %v483 = vmul.f32 %v411, %v311
    %v484 = vmul.f32 %v412, %v314
    %v485 = vadd.f32 %v469, %v470
    %v486 = vrot.slane %v485, 4
    %v487 = vadd.f32 %v485, %v486
    %v488 = vrot.slane %v487, 2
    %v489 = vadd.f32 %v487, %v488
    %v490 = vrot.slane %v489, 1
    %v491 = vadd.f32 %v489, %v490
    %v492 = vadd.f32 %v471, %v472
    %v493 = vrot.slane %v492, 4
    %v494 = vadd.f32 %v492, %v493
    %v495 = vrot.slane %v494, 2
    %v496 = vadd.f32 %v494, %v495
    %v497 = vrot.slane %v496, 1
    %v498 = vadd.f32 %v496, %v497
    %v499 = vadd.f32 %v473, %v474
    %v500 = vrot.slane %v499, 4
    %v501 = vadd.f32 %v499, %v500
    %v502 = vrot.slane %v501, 2
    %v503 = vadd.f32 %v501, %v502
    %v504 = vrot.slane %v503, 1
    %v505 = vadd.f32 %v503, %v504
    %v506 = vadd.f32 %v475, %v476
    %v507 = vrot.slane %v506, 4
    %v508 = vadd.f32 %v506, %v507
    %v509 = vrot.slane %v508, 2
    %v510 = vadd.f32 %v508, %v509
    %v511 = vrot.slane %v510, 1
    %v512 = vadd.f32 %v510, %v511
    %v513 = vadd.f32 %v477, %v478
    %v514 = vrot.slane %v513, 4
    %v515 = vadd.f32 %v513, %v514
    %v516 = vrot.slane %v515, 2
    %v517 = vadd.f32 %v515, %v516
    %v518 = vrot.slane %v517, 1
    %v519 = vadd.f32 %v517, %v518
    %v520 = vadd.f32 %v479, %v480
    %v521 = vrot.slane %v520, 4
    %v522 = vadd.f32 %v520, %v521
    %v523 = vrot.slane %v522, 2
    %v524 = vadd.f32 %v522, %v523
    %v525 = vrot.slane %v524, 1
    %v526 = vadd.f32 %v524, %v525
    %v527 = vadd.f32 %v481, %v482
    %v528 = vrot.slane %v527, 4
    %v529 = vadd.f32 %v527, %v528
    %v530 = vrot.slane %v529, 2
    %v531 = vadd.f32 %v529, %v530
    %v532 = vrot.slane %v531, 1
    %v533 = vadd.f32 %v531, %v532
    %v534 = vadd.f32 %v483, %v484
    %v535 = vrot.slane %v534, 4
    %v536 = vadd.f32 %v534, %v535
    %v537 = vrot.slane %v536, 2
    %v538 = vadd.f32 %v536, %v537
    %v539 = vrot.slane %v538, 1
    %v540 = vadd.f32 %v538, %v539
    %v541 = vmul.f32 %v419, %v419
    %v542 = vmul.f32 %v426, %v426
    %v543 = vmul.f32 %v433, %v433
    %v544 = vmul.f32 %v440, %v440
    %v545 = vmul.f32 %v447, %v447
    %v546 = vmul.f32 %v454, %v454
    %v547 = vmul.f32 %v461, %v461
    %v548 = vmul.f32 %v468, %v468
    %v549 = vsub.f32 %v491, %v541
    %v550 = vsub.f32 %v498, %v542
    %v551 = vsub.f32 %v505, %v543
    %v552 = vsub.f32 %v512, %v544
    %v553 = vsub.f32 %v519, %v545
    %v554 = vsub.f32 %v526, %v546
    %v555 = vsub.f32 %v533, %v547
    %v556 = vsub.f32 %v540, %v548
    %v557 = vmax.f32 %v549, 0.0
    %v558 = vmax.f32 %v550, 0.0
    %v559 = vmax.f32 %v551, 0.0
    %v560 = vmax.f32 %v552, 0.0
    %v561 = vmax.f32 %v553, 0.0
    %v562 = vmax.f32 %v554, 0.0
    %v563 = vmax.f32 %v555, 0.0
    %v564 = vmax.f32 %v556, 0.0
    %v565 = vadd.f32 %v557, 1e-05
    %v566 = vadd.f32 %v558, 1e-05
    %v567 = vadd.f32 %v559, 1e-05
    %v568 = vadd.f32 %v560, 1e-05
    %v569 = vadd.f32 %v561, 1e-05
    %v570 = vadd.f32 %v562, 1e-05
    %v571 = vadd.f32 %v563, 1e-05
    %v572 = vadd.f32 %v564, 1e-05
    %v573 = vrsqrt.pop %v565
    %v574 = vrsqrt.pop %v566
    %v575 = vrsqrt.pop %v567
    %v576 = vrsqrt.pop %v568
    %v577 = vrsqrt.pop %v569
    %v578 = vrsqrt.pop %v570
    %v579 = vrsqrt.pop %v571
    %v580 = vrsqrt.pop %v572
    %v581 = vstv %s67
    %v582 = vmul.f32 %v573, %v581
    %v583 = vmul.f32 %v574, %v581
    %v584 = vmul.f32 %v575, %v581
    %v585 = vmul.f32 %v576, %v581
    %v586 = vmul.f32 %v577, %v581
    %v587 = vmul.f32 %v578, %v581
    %v588 = vmul.f32 %v579, %v581
    %v589 = vmul.f32 %v580, %v581
    %v590 = vmul.f32 %v255, %v582
    %v591 = vmul.f32 %v258, %v582
    %v592 = vmul.f32 %v263, %v583
    %v593 = vmul.f32 %v266, %v583
    %v594 = vmul.f32 %v271, %v584
    %v595 = vmul.f32 %v274, %v584
    %v596 = vmul.f32 %v279, %v585
    %v597 = vmul.f32 %v282, %v585
    %v598 = vmul.f32 %v287, %v586
    %v599 = vmul.f32 %v290, %v586
    %v600 = vmul.f32 %v295, %v587
    %v601 = vmul.f32 %v298, %v587
    %v602 = vmul.f32 %v303, %v588
    %v603 = vmul.f32 %v306, %v588
    %v604 = vmul.f32 %v311, %v589
    %v605 = vmul.f32 %v314, %v589
    %v606 = vmul.f32 %v419, %v582
    %v607 = vmul.f32 %v426, %v583
    %v608 = vmul.f32 %v433, %v584
    %v609 = vmul.f32 %v440, %v585
    %v610 = vmul.f32 %v447, %v586
    %v611 = vmul.f32 %v454, %v587
    %v612 = vmul.f32 %v461, %v588
    %v613 = vmul.f32 %v468, %v589
    %v614 = vstv %s68
    %v615 = vsub.f32 %v614, %v606
    %v616 = vsub.f32 %v614, %v607
    %v617 = vsub.f32 %v614, %v608
    %v618 = vsub.f32 %v614, %v609
    %v619 = vsub.f32 %v614, %v610
    %v620 = vsub.f32 %v614, %v611
    %v621 = vsub.f32 %v614, %v612
    %v622 = vsub.f32 %v614, %v613
    %v623 = vadd.f32 %v590, %v615
    %v624 = vadd.f32 %v591, %v615
    %v625 = vadd.f32 %v592, %v616
    %v626 = vadd.f32 %v593, %v616
    %v627 = vadd.f32 %v594, %v617
    %v628 = vadd.f32 %v595, %v617
    %v629 = vadd.f32 %v596, %v618
    %v630 = vadd.f32 %v597, %v618
    %v631 = vadd.f32 %v598, %v619
    %v632 = vadd.f32 %v599, %v619
    %v633 = vadd.f32 %v600, %v620
    %v634 = vadd.f32 %v601, %v620
    %v635 = vadd.f32 %v602, %v621
    %v636 = vadd.f32 %v603, %v621
    %v637 = vadd.f32 %v604, %v622
    %v638 = vadd.f32 %v605, %v622
    %v639 = vmax.f32 %v623, 0.0
    %v640 = vmax.f32 %v624, 0.0
    %v641 = vmax.f32 %v625, 0.0
    %v642 = vmax.f32 %v626, 0.0
    %v643 = vmax.f32 %v627, 0.0
    %v644 = vmax.f32 %v628, 0.0
    %v645 = vmax.f32 %v629, 0.0
    %v646 = vmax.f32 %v630, 0.0
    %v647 = vmax.f32 %v631, 0.0
    %v648 = vmax.f32 %v632, 0.0
    %v649 = vmax.f32 %v633, 0.0
    %v650 = vmax.f32 %v634, 0.0
    %v651 = vmax.f32 %v635, 0.0
    %v652 = vmax.f32 %v636, 0.0
    %v653 = vmax.f32 %v637, 0.0
    %v654 = vmax.f32 %v638, 0.0
    %v655 = vpack.c.bf16 %v640, %v639
    %v656 = vpack.c.bf16 %v642, %v641
    %v657 = vpack.c.bf16 %v644, %v643
    %v658 = vpack.c.bf16 %v646, %v645
    %v659 = vpack.c.bf16 %v648, %v647
    %v660 = vpack.c.bf16 %v650, %v649
    %v661 = vpack.c.bf16 %v652, %v651
    %v662 = vpack.c.bf16 %v654, %v653
    %v663 = vld [vmem:[#allocation4] sm:$0xf]
    %v664 = vld [vmem:[#allocation4 + $0x4] sm:$0xf]
    %v665 = vld [vmem:[#allocation4 + $0x8] sm:$0xf]
    %v666 = vld [vmem:[#allocation4 + $0xc] sm:$0xf]
    %v667 = vld [vmem:[#allocation4 + $0x10] sm:$0xf]
    %v668 = vld [vmem:[#allocation4 + $0x14] sm:$0xf]
    %v669 = vld [vmem:[#allocation4 + $0x18] sm:$0xf]
    %v670 = vld [vmem:[#allocation4 + $0x1c] sm:$0xf]
    %v671 = vld [vmem:[#allocation4 + $0x20] sm:$0xf]
    %v672 = vld [vmem:[#allocation4 + $0x24] sm:$0xf]
    %v673 = vld [vmem:[#allocation4 + $0x28] sm:$0xf]
    %v674 = vld [vmem:[#allocation4 + $0x2c] sm:$0xf]
    %v675 = vld [vmem:[#allocation4 + $0x30] sm:$0xf]
    %v676 = vld [vmem:[#allocation4 + $0x34] sm:$0xf]
    %v677 = vld [vmem:[#allocation4 + $0x38] sm:$0xf]
    %v678 = vld [vmem:[#allocation4 + $0x3c] sm:$0xf]
    %v695 = vunpack.c.l.b16 %v663
    %v696 = vunpack.c.l.b16 %v664
    %v697 = vunpack.c.l.b16 %v665
    %v698 = vunpack.c.l.b16 %v666
    %v699 = vunpack.c.l.b16 %v667
    %v700 = vunpack.c.l.b16 %v668
    %v701 = vunpack.c.l.b16 %v669
    %v702 = vunpack.c.l.b16 %v670
    %v703 = vunpack.c.l.b16 %v671
    %v704 = vunpack.c.l.b16 %v672
    %v705 = vunpack.c.l.b16 %v673
    %v706 = vunpack.c.l.b16 %v674
    %v707 = vunpack.c.l.b16 %v675
    %v708 = vunpack.c.l.b16 %v676
    %v709 = vunpack.c.l.b16 %v677
    %v710 = vunpack.c.l.b16 %v678
    %v711 = vpack.c.b16 %v696, %v695
    %v712 = vpack.c.b16 %v698, %v697
    %v713 = vpack.c.b16 %v700, %v699
    %v714 = vpack.c.b16 %v702, %v701
    %v715 = vpack.c.b16 %v704, %v703
    %v716 = vpack.c.b16 %v706, %v705
    %v717 = vpack.c.b16 %v708, %v707
    %v718 = vpack.c.b16 %v710, %v709
    %727 = vmatprep.subr.bf16.mxu0 0
    %728 = vmatpush1.bf16.msra.mxu0 %v718
    %729 = vmatprep.subr.bf16.mxu0 0
    %730 = vmatpush1.bf16.msra.mxu0 %v717
    %731 = vmatprep.subr.bf16.mxu0 0
    %732 = vmatpush1.bf16.msra.mxu0 %v716
    %733 = vmatprep.subr.bf16.mxu0 0
    %734 = vmatpush1.bf16.msra.mxu0 %v715
    %735 = vmatprep.subr.bf16.mxu0 0
    %736 = vmatpush1.bf16.msra.mxu0 %v714
    %737 = vmatprep.subr.bf16.mxu0 0
    %738 = vmatpush1.bf16.msra.mxu0 %v713
    %739 = vmatprep.subr.bf16.mxu0 0
    %740 = vmatpush1.bf16.msra.mxu0 %v712
    %741 = vmatprep.subr.bf16.mxu0 0
    %742 = vmatpush1.bf16.msra.mxu0 %v711
    %743 = vmatprep.subr.bf16.mxu0 0
    %744 = vmatpush2.bf16.msra.mxu0 0
    %745 = vmatprep.subr.bf16.mxu0 0
    %746 = vmatpush2.bf16.msra.mxu0 0
    %747 = vmatprep.subr.bf16.mxu0 0
    %748 = vmatpush2.bf16.msra.mxu0 0
    %749 = vmatprep.subr.bf16.mxu0 0
    %750 = vmatpush2.bf16.msra.mxu0 0
    %751 = vmatprep.subr.bf16.mxu0 0
    %752 = vmatpush2.bf16.msra.mxu0 0
    %753 = vmatprep.subr.bf16.mxu0 0
    %754 = vmatpush2.bf16.msra.mxu0 0
    %755 = vmatprep.subr.bf16.mxu0 0
    %756 = vmatpush2.bf16.msra.mxu0 0
    %757 = vmatprep.subr.bf16.mxu0 0
    %758 = vmatpush2.bf16.msra.mxu0 0
    %759 = vmatprep.mubr.bf16.mxu0 0
    %760 = vmatmul.mubr.bf16.gmra.mxu0 %v655
    %v761 = vpop.f32.mrf.mxu0
    %v762 = vadd.f32 0.0, %v761
    %v763 = vpop.f32.mrf.mxu0
    %v764 = vpop.f32.mrf.mxu0
    %v765 = vadd.f32 0.0, %v764
    %v766 = vpop.f32.mrf.mxu0
    %767 = vmatprep.mubr.bf16.mxu0 0
    %768 = vmatmul.mubr.bf16.gmra.mxu0 %v656
    %v769 = vpop.f32.mrf.mxu0
    %v770 = vadd.f32 0.0, %v769
    %v771 = vpop.f32.mrf.mxu0
    %v772 = vpop.f32.mrf.mxu0
    %v773 = vadd.f32 0.0, %v772
    %v774 = vpop.f32.mrf.mxu0
    %775 = vmatprep.mubr.bf16.mxu0 0
    %776 = vmatmul.mubr.bf16.gmra.mxu0 %v657
    %v777 = vpop.f32.mrf.mxu0
    %v778 = vadd.f32 0.0, %v777
    %v779 = vpop.f32.mrf.mxu0
    %v780 = vpop.f32.mrf.mxu0
    %v781 = vadd.f32 0.0, %v780
    %v782 = vpop.f32.mrf.mxu0
    %783 = vmatprep.mubr.bf16.mxu0 0
    %784 = vmatmul.mubr.bf16.gmra.mxu0 %v658
    %v785 = vpop.f32.mrf.mxu0
    %v786 = vadd.f32 0.0, %v785
    %v787 = vpop.f32.mrf.mxu0
    %v788 = vpop.f32.mrf.mxu0
    %v789 = vadd.f32 0.0, %v788
    %v790 = vpop.f32.mrf.mxu0
    %791 = vmatprep.mubr.bf16.mxu0 0
    %792 = vmatmul.mubr.bf16.gmra.mxu0 %v659
    %v793 = vpop.f32.mrf.mxu0
    %v794 = vadd.f32 0.0, %v793
    %v795 = vpop.f32.mrf.mxu0
    %v796 = vpop.f32.mrf.mxu0
    %v797 = vadd.f32 0.0, %v796
    %v798 = vpop.f32.mrf.mxu0
    %799 = vmatprep.mubr.bf16.mxu0 0
    %800 = vmatmul.mubr.bf16.gmra.mxu0 %v660
    %v801 = vpop.f32.mrf.mxu0
    %v802 = vadd.f32 0.0, %v801
    %v803 = vpop.f32.mrf.mxu0
    %v804 = vpop.f32.mrf.mxu0
    %v805 = vadd.f32 0.0, %v804
    %v806 = vpop.f32.mrf.mxu0
    %807 = vmatprep.mubr.bf16.mxu0 0
    %808 = vmatmul.mubr.bf16.gmra.mxu0 %v661
    %v809 = vpop.f32.mrf.mxu0
    %v810 = vadd.f32 0.0, %v809
    %v811 = vpop.f32.mrf.mxu0
    %v812 = vpop.f32.mrf.mxu0
    %v813 = vadd.f32 0.0, %v812
    %v814 = vpop.f32.mrf.mxu0
    %815 = vmatprep.mubr.bf16.mxu0 0
    %816 = vmatmul.mubr.bf16.gmra.mxu0 %v662
    %v817 = vpop.f32.mrf.mxu0
    %v818 = vadd.f32 0.0, %v817
    %v819 = vpop.f32.mrf.mxu0
    %v820 = vpop.f32.mrf.mxu0
    %v821 = vadd.f32 0.0, %v820
    %v822 = vpop.f32.mrf.mxu0
    %823 = vdwg.mxu0
    %v824 = vpack.c.bf16 %v765, %v762
    %v825 = vpack.c.bf16 %v773, %v770
    %v826 = vpack.c.bf16 %v781, %v778
    %v827 = vpack.c.bf16 %v789, %v786
    %v828 = vpack.c.bf16 %v797, %v794
    %v829 = vpack.c.bf16 %v805, %v802
    %v830 = vpack.c.bf16 %v813, %v810
    %v831 = vpack.c.bf16 %v821, %v818
    %v832 = vld [vmem:[%s5] sm:$0x1]
    %v834 = vlaneseq
    %v835 = vshrl.u32 %v834, 7
    %v836 = vsub.s32 0, %v835
    %v837 = vrot.slane %v832, %v836
    %839 = vmatprep.subr.bf16.mxu0 0
    %840 = vmatpush1.bf16.msra.mxu0 %v831
    %841 = vmatprep.subr.bf16.mxu0 0
    %842 = vmatpush1.bf16.msra.mxu0 %v830
    %843 = vmatprep.subr.bf16.mxu0 0
    %844 = vmatpush1.bf16.msra.mxu0 %v829
    %845 = vmatprep.subr.bf16.mxu0 0
    %846 = vmatpush1.bf16.msra.mxu0 %v828
    %847 = vmatprep.subr.bf16.mxu0 0
    %848 = vmatpush1.bf16.msra.mxu0 %v827
    %849 = vmatprep.subr.bf16.mxu0 0
    %850 = vmatpush1.bf16.msra.mxu0 %v826
    %851 = vmatprep.subr.bf16.mxu0 0
    %852 = vmatpush1.bf16.msra.mxu0 %v825
    %853 = vmatprep.subr.bf16.mxu0 0
    %854 = vmatpush1.bf16.msra.mxu0 %v824
    %855 = vmatprep.subr.bf16.mxu0 0
    %856 = vmatpush2.bf16.msra.mxu0 0
    %857 = vmatprep.subr.bf16.mxu0 0
    %858 = vmatpush2.bf16.msra.mxu0 0
    %859 = vmatprep.subr.bf16.mxu0 0
    %860 = vmatpush2.bf16.msra.mxu0 0
    %861 = vmatprep.subr.bf16.mxu0 0
    %862 = vmatpush2.bf16.msra.mxu0 0
    %863 = vmatprep.subr.bf16.mxu0 0
    %864 = vmatpush2.bf16.msra.mxu0 0
    %865 = vmatprep.subr.bf16.mxu0 0
    %866 = vmatpush2.bf16.msra.mxu0 0
    %867 = vmatprep.subr.bf16.mxu0 0
    %868 = vmatpush2.bf16.msra.mxu0 0
    %869 = vmatprep.subr.bf16.mxu0 0
    %870 = vmatpush2.bf16.msra.mxu0 0
    %871 = vmatprep.mubr.bf16.mxu0 0
    %872 = vmatmul.mubr.bf16.gmra.mxu0 %v156
    %v873 = vpop.f32.mrf.mxu0
    %v874 = vadd.f32 %v837, %v873
    %v875 = vpop.f32.mrf.mxu0
    %v876 = vpop.f32.mrf.mxu0
    %v877 = vadd.f32 %v837, %v876
    %v878 = vpop.f32.mrf.mxu0
    %879 = vmatprep.mubr.bf16.mxu0 0
    %880 = vmatmul.mubr.bf16.gmra.mxu0 %v157
    %v881 = vpop.f32.mrf.mxu0
    %v882 = vadd.f32 %v837, %v881
    %v883 = vpop.f32.mrf.mxu0
    %v884 = vpop.f32.mrf.mxu0
    %v885 = vadd.f32 %v837, %v884
    %v886 = vpop.f32.mrf.mxu0
    %887 = vmatprep.mubr.bf16.mxu0 0
    %888 = vmatmul.mubr.bf16.gmra.mxu0 %v158
    %v889 = vpop.f32.mrf.mxu0
    %v890 = vadd.f32 %v837, %v889
    %v891 = vpop.f32.mrf.mxu0
    %v892 = vpop.f32.mrf.mxu0
    %v893 = vadd.f32 %v837, %v892
    %v894 = vpop.f32.mrf.mxu0
    %895 = vmatprep.mubr.bf16.mxu0 0
    %896 = vmatmul.mubr.bf16.gmra.mxu0 %v159
    %v897 = vpop.f32.mrf.mxu0
    %v898 = vadd.f32 %v837, %v897
    %v899 = vpop.f32.mrf.mxu0
    %v900 = vpop.f32.mrf.mxu0
    %v901 = vadd.f32 %v837, %v900
    %v902 = vpop.f32.mrf.mxu0
    %903 = vmatprep.mubr.bf16.mxu0 0
    %904 = vmatmul.mubr.bf16.gmra.mxu0 %v160
    %v905 = vpop.f32.mrf.mxu0
    %v906 = vadd.f32 %v837, %v905
    %v907 = vpop.f32.mrf.mxu0
    %v908 = vpop.f32.mrf.mxu0
    %v909 = vadd.f32 %v837, %v908
    %v910 = vpop.f32.mrf.mxu0
    %911 = vmatprep.mubr.bf16.mxu0 0
    %912 = vmatmul.mubr.bf16.gmra.mxu0 %v161
    %v913 = vpop.f32.mrf.mxu0
    %v914 = vadd.f32 %v837, %v913
    %v915 = vpop.f32.mrf.mxu0
    %v916 = vpop.f32.mrf.mxu0
    %v917 = vadd.f32 %v837, %v916
    %v918 = vpop.f32.mrf.mxu0
    %919 = vmatprep.mubr.bf16.mxu0 0
    %920 = vmatmul.mubr.bf16.gmra.mxu0 %v162
    %v921 = vpop.f32.mrf.mxu0
    %v922 = vadd.f32 %v837, %v921
    %v923 = vpop.f32.mrf.mxu0
    %v924 = vpop.f32.mrf.mxu0
    %v925 = vadd.f32 %v837, %v924
    %v926 = vpop.f32.mrf.mxu0
    %927 = vmatprep.mubr.bf16.mxu0 0
    %928 = vmatmul.mubr.bf16.gmra.mxu0 %v163
    %v929 = vpop.f32.mrf.mxu0
    %v930 = vadd.f32 %v837, %v929
    %v931 = vpop.f32.mrf.mxu0
    %v932 = vpop.f32.mrf.mxu0
    %v933 = vadd.f32 %v837, %v932
    %v934 = vpop.f32.mrf.mxu0
    %935 = vdwg.mxu0
    %v936 = vmul.f32 %v874, %v320
    %v937 = vmul.f32 %v877, %v325
    %v938 = vmul.f32 %v882, %v330
    %v939 = vmul.f32 %v885, %v335
    %v940 = vmul.f32 %v890, %v340
    %v941 = vmul.f32 %v893, %v345
    %v942 = vmul.f32 %v898, %v350
    %v943 = vmul.f32 %v901, %v355
    %v944 = vmul.f32 %v906, %v360
    %v945 = vmul.f32 %v909, %v365
    %v946 = vmul.f32 %v914, %v370
    %v947 = vmul.f32 %v917, %v375
    %v948 = vmul.f32 %v922, %v380
    %v949 = vmul.f32 %v925, %v385
    %v950 = vmul.f32 %v930, %v390
    %v951 = vmul.f32 %v933, %v395
    %v952 = vadd.f32 %v936, %v937
    %v953 = vrot.slane %v952, 4
    %v954 = vadd.f32 %v952, %v953
    %v955 = vrot.slane %v954, 2
    %v956 = vadd.f32 %v954, %v955
    %v957 = vrot.slane %v956, 1
    %v958 = vadd.f32 %v956, %v957
    %v959 = vadd.f32 %v938, %v939
    %v960 = vrot.slane %v959, 4
    %v961 = vadd.f32 %v959, %v960
    %v962 = vrot.slane %v961, 2
    %v963 = vadd.f32 %v961, %v962
    %v964 = vrot.slane %v963, 1
    %v965 = vadd.f32 %v963, %v964
    %v966 = vadd.f32 %v940, %v941
    %v967 = vrot.slane %v966, 4
    %v968 = vadd.f32 %v966, %v967
    %v969 = vrot.slane %v968, 2
    %v970 = vadd.f32 %v968, %v969
    %v971 = vrot.slane %v970, 1
    %v972 = vadd.f32 %v970, %v971
    %v973 = vadd.f32 %v942, %v943
    %v974 = vrot.slane %v973, 4
    %v975 = vadd.f32 %v973, %v974
    %v976 = vrot.slane %v975, 2
    %v977 = vadd.f32 %v975, %v976
    %v978 = vrot.slane %v977, 1
    %v979 = vadd.f32 %v977, %v978
    %v980 = vadd.f32 %v944, %v945
    %v981 = vrot.slane %v980, 4
    %v982 = vadd.f32 %v980, %v981
    %v983 = vrot.slane %v982, 2
    %v984 = vadd.f32 %v982, %v983
    %v985 = vrot.slane %v984, 1
    %v986 = vadd.f32 %v984, %v985
    %v987 = vadd.f32 %v946, %v947
    %v988 = vrot.slane %v987, 4
    %v989 = vadd.f32 %v987, %v988
    %v990 = vrot.slane %v989, 2
    %v991 = vadd.f32 %v989, %v990
    %v992 = vrot.slane %v991, 1
    %v993 = vadd.f32 %v991, %v992
    %v994 = vadd.f32 %v948, %v949
    %v995 = vrot.slane %v994, 4
    %v996 = vadd.f32 %v994, %v995
    %v997 = vrot.slane %v996, 2
    %v998 = vadd.f32 %v996, %v997
    %v999 = vrot.slane %v998, 1
    %v1000 = vadd.f32 %v998, %v999
    %v1001 = vadd.f32 %v950, %v951
    %v1002 = vrot.slane %v1001, 4
    %v1003 = vadd.f32 %v1001, %v1002
    %v1004 = vrot.slane %v1003, 2
    %v1005 = vadd.f32 %v1003, %v1004
    %v1006 = vrot.slane %v1005, 1
    %v1007 = vadd.f32 %v1005, %v1006
    %v1008 = vmul.f32 %v936, %v874
    %v1009 = vmul.f32 %v937, %v877
    %v1010 = vmul.f32 %v938, %v882
    %v1011 = vmul.f32 %v939, %v885
    %v1012 = vmul.f32 %v940, %v890
    %v1013 = vmul.f32 %v941, %v893
    %v1014 = vmul.f32 %v942, %v898
    %v1015 = vmul.f32 %v943, %v901
    %v1016 = vmul.f32 %v944, %v906
    %v1017 = vmul.f32 %v945, %v909
    %v1018 = vmul.f32 %v946, %v914
    %v1019 = vmul.f32 %v947, %v917
    %v1020 = vmul.f32 %v948, %v922
    %v1021 = vmul.f32 %v949, %v925
    %v1022 = vmul.f32 %v950, %v930
    %v1023 = vmul.f32 %v951, %v933
    %v1024 = vadd.f32 %v1008, %v1009
    %v1025 = vrot.slane %v1024, 4
    %v1026 = vadd.f32 %v1024, %v1025
    %v1027 = vrot.slane %v1026, 2
    %v1028 = vadd.f32 %v1026, %v1027
    %v1029 = vrot.slane %v1028, 1
    %v1030 = vadd.f32 %v1028, %v1029
    %v1031 = vadd.f32 %v1010, %v1011
    %v1032 = vrot.slane %v1031, 4
    %v1033 = vadd.f32 %v1031, %v1032
    %v1034 = vrot.slane %v1033, 2
    %v1035 = vadd.f32 %v1033, %v1034
    %v1036 = vrot.slane %v1035, 1
    %v1037 = vadd.f32 %v1035, %v1036
    %v1038 = vadd.f32 %v1012, %v1013
    %v1039 = vrot.slane %v1038, 4
    %v1040 = vadd.f32 %v1038, %v1039
    %v1041 = vrot.slane %v1040, 2
    %v1042 = vadd.f32 %v1040, %v1041
    %v1043 = vrot.slane %v1042, 1
    %v1044 = vadd.f32 %v1042, %v1043
    %v1045 = vadd.f32 %v1014, %v1015
    %v1046 = vrot.slane %v1045, 4
    %v1047 = vadd.f32 %v1045, %v1046
    %v1048 = vrot.slane %v1047, 2
    %v1049 = vadd.f32 %v1047, %v1048
    %v1050 = vrot.slane %v1049, 1
    %v1051 = vadd.f32 %v1049, %v1050
    %v1052 = vadd.f32 %v1016, %v1017
    %v1053 = vrot.slane %v1052, 4
    %v1054 = vadd.f32 %v1052, %v1053
    %v1055 = vrot.slane %v1054, 2
    %v1056 = vadd.f32 %v1054, %v1055
    %v1057 = vrot.slane %v1056, 1
    %v1058 = vadd.f32 %v1056, %v1057
    %v1059 = vadd.f32 %v1018, %v1019
    %v1060 = vrot.slane %v1059, 4
    %v1061 = vadd.f32 %v1059, %v1060
    %v1062 = vrot.slane %v1061, 2
    %v1063 = vadd.f32 %v1061, %v1062
    %v1064 = vrot.slane %v1063, 1
    %v1065 = vadd.f32 %v1063, %v1064
    %v1066 = vadd.f32 %v1020, %v1021
    %v1067 = vrot.slane %v1066, 4
    %v1068 = vadd.f32 %v1066, %v1067
    %v1069 = vrot.slane %v1068, 2
    %v1070 = vadd.f32 %v1068, %v1069
    %v1071 = vrot.slane %v1070, 1
    %v1072 = vadd.f32 %v1070, %v1071
    %v1073 = vadd.f32 %v1022, %v1023
    %v1074 = vrot.slane %v1073, 4
    %v1075 = vadd.f32 %v1073, %v1074
    %v1076 = vrot.slane %v1075, 2
    %v1077 = vadd.f32 %v1075, %v1076
    %v1078 = vrot.slane %v1077, 1
    %v1079 = vadd.f32 %v1077, %v1078
    %v1080 = vmul.f32 %v958, %v958
    %v1081 = vmul.f32 %v965, %v965
    %v1082 = vmul.f32 %v972, %v972
    %v1083 = vmul.f32 %v979, %v979
    %v1084 = vmul.f32 %v986, %v986
    %v1085 = vmul.f32 %v993, %v993
    %v1086 = vmul.f32 %v1000, %v1000
    %v1087 = vmul.f32 %v1007, %v1007
    %v1088 = vsub.f32 %v1030, %v1080
    %v1089 = vsub.f32 %v1037, %v1081
    %v1090 = vsub.f32 %v1044, %v1082
    %v1091 = vsub.f32 %v1051, %v1083
    %v1092 = vsub.f32 %v1058, %v1084
    %v1093 = vsub.f32 %v1065, %v1085
    %v1094 = vsub.f32 %v1072, %v1086
    %v1095 = vsub.f32 %v1079, %v1087
    %v1096 = vmax.f32 %v1088, 0.0
    %v1097 = vmax.f32 %v1089, 0.0
    %v1098 = vmax.f32 %v1090, 0.0
    %v1099 = vmax.f32 %v1091, 0.0
    %v1100 = vmax.f32 %v1092, 0.0
    %v1101 = vmax.f32 %v1093, 0.0
    %v1102 = vmax.f32 %v1094, 0.0
    %v1103 = vmax.f32 %v1095, 0.0
    %v1104 = vadd.f32 %v1096, 1e-05
    %v1105 = vadd.f32 %v1097, 1e-05
    %v1106 = vadd.f32 %v1098, 1e-05
    %v1107 = vadd.f32 %v1099, 1e-05
    %v1108 = vadd.f32 %v1100, 1e-05
    %v1109 = vadd.f32 %v1101, 1e-05
    %v1110 = vadd.f32 %v1102, 1e-05
    %v1111 = vadd.f32 %v1103, 1e-05
    %v1112 = vrsqrt.pop %v1104
    %v1113 = vrsqrt.pop %v1105
    %v1114 = vrsqrt.pop %v1106
    %v1115 = vrsqrt.pop %v1107
    %v1116 = vrsqrt.pop %v1108
    %v1117 = vrsqrt.pop %v1109
    %v1118 = vrsqrt.pop %v1110
    %v1119 = vrsqrt.pop %v1111
    %v1120 = vmul.f32 %v1112, %v581
    %v1121 = vmul.f32 %v1113, %v581
    %v1122 = vmul.f32 %v1114, %v581
    %v1123 = vmul.f32 %v1115, %v581
    %v1124 = vmul.f32 %v1116, %v581
    %v1125 = vmul.f32 %v1117, %v581
    %v1126 = vmul.f32 %v1118, %v581
    %v1127 = vmul.f32 %v1119, %v581
    %v1128 = vmul.f32 %v874, %v1120
    %v1129 = vmul.f32 %v877, %v1120
    %v1130 = vmul.f32 %v882, %v1121
    %v1131 = vmul.f32 %v885, %v1121
    %v1132 = vmul.f32 %v890, %v1122
    %v1133 = vmul.f32 %v893, %v1122
    %v1134 = vmul.f32 %v898, %v1123
    %v1135 = vmul.f32 %v901, %v1123
    %v1136 = vmul.f32 %v906, %v1124
    %v1137 = vmul.f32 %v909, %v1124
    %v1138 = vmul.f32 %v914, %v1125
    %v1139 = vmul.f32 %v917, %v1125
    %v1140 = vmul.f32 %v922, %v1126
    %v1141 = vmul.f32 %v925, %v1126
    %v1142 = vmul.f32 %v930, %v1127
    %v1143 = vmul.f32 %v933, %v1127
    %v1144 = vmul.f32 %v958, %v1120
    %v1145 = vmul.f32 %v965, %v1121
    %v1146 = vmul.f32 %v972, %v1122
    %v1147 = vmul.f32 %v979, %v1123
    %v1148 = vmul.f32 %v986, %v1124
    %v1149 = vmul.f32 %v993, %v1125
    %v1150 = vmul.f32 %v1000, %v1126
    %v1151 = vmul.f32 %v1007, %v1127
    %v1152 = vsub.f32 %v614, %v1144
    %v1153 = vsub.f32 %v614, %v1145
    %v1154 = vsub.f32 %v614, %v1146
    %v1155 = vsub.f32 %v614, %v1147
    %v1156 = vsub.f32 %v614, %v1148
    %v1157 = vsub.f32 %v614, %v1149
    %v1158 = vsub.f32 %v614, %v1150
    %v1159 = vsub.f32 %v614, %v1151
    %v1160 = vadd.f32 %v1128, %v1152
    %v1161 = vadd.f32 %v1129, %v1152
    %v1162 = vadd.f32 %v1130, %v1153
    %v1163 = vadd.f32 %v1131, %v1153
    %v1164 = vadd.f32 %v1132, %v1154
    %v1165 = vadd.f32 %v1133, %v1154
    %v1166 = vadd.f32 %v1134, %v1155
    %v1167 = vadd.f32 %v1135, %v1155
    %v1168 = vadd.f32 %v1136, %v1156
    %v1169 = vadd.f32 %v1137, %v1156
    %v1170 = vadd.f32 %v1138, %v1157
    %v1171 = vadd.f32 %v1139, %v1157
    %v1172 = vadd.f32 %v1140, %v1158
    %v1173 = vadd.f32 %v1141, %v1158
    %v1174 = vadd.f32 %v1142, %v1159
    %v1175 = vadd.f32 %v1143, %v1159
    %v1176 = vmax.f32 %v1160, 0.0
    %v1177 = vmax.f32 %v1161, 0.0
    %v1178 = vmax.f32 %v1162, 0.0
    %v1179 = vmax.f32 %v1163, 0.0
    %v1180 = vmax.f32 %v1164, 0.0
    %v1181 = vmax.f32 %v1165, 0.0
    %v1182 = vmax.f32 %v1166, 0.0
    %v1183 = vmax.f32 %v1167, 0.0
    %v1184 = vmax.f32 %v1168, 0.0
    %v1185 = vmax.f32 %v1169, 0.0
    %v1186 = vmax.f32 %v1170, 0.0
    %v1187 = vmax.f32 %v1171, 0.0
    %v1188 = vmax.f32 %v1172, 0.0
    %v1189 = vmax.f32 %v1173, 0.0
    %v1190 = vmax.f32 %v1174, 0.0
    %v1191 = vmax.f32 %v1175, 0.0
    %v1192 = vpack.c.bf16 %v1177, %v1176
    %v1193 = vpack.c.bf16 %v1179, %v1178
    %v1194 = vpack.c.bf16 %v1181, %v1180
    %v1195 = vpack.c.bf16 %v1183, %v1182
    %v1196 = vpack.c.bf16 %v1185, %v1184
    %v1197 = vpack.c.bf16 %v1187, %v1186
    %v1198 = vpack.c.bf16 %v1189, %v1188
    %v1199 = vpack.c.bf16 %v1191, %v1190
    %v1200 = vld [vmem:[#allocation7] sm:$0xf]
    %v1201 = vld [vmem:[#allocation7 + $0x4] sm:$0xf]
    %v1202 = vld [vmem:[#allocation7 + $0x8] sm:$0xf]
    %v1203 = vld [vmem:[#allocation7 + $0xc] sm:$0xf]
    %v1204 = vld [vmem:[#allocation7 + $0x10] sm:$0xf]
    %v1205 = vld [vmem:[#allocation7 + $0x14] sm:$0xf]
    %v1206 = vld [vmem:[#allocation7 + $0x18] sm:$0xf]
    %v1207 = vld [vmem:[#allocation7 + $0x1c] sm:$0xf]
    %v1208 = vld [vmem:[#allocation7 + $0x20] sm:$0xf]
    %v1209 = vld [vmem:[#allocation7 + $0x24] sm:$0xf]
    %v1210 = vld [vmem:[#allocation7 + $0x28] sm:$0xf]
    %v1211 = vld [vmem:[#allocation7 + $0x2c] sm:$0xf]
    %v1212 = vld [vmem:[#allocation7 + $0x30] sm:$0xf]
    %v1213 = vld [vmem:[#allocation7 + $0x34] sm:$0xf]
    %v1214 = vld [vmem:[#allocation7 + $0x38] sm:$0xf]
    %v1215 = vld [vmem:[#allocation7 + $0x3c] sm:$0xf]
    %v1232 = vunpack.c.l.b16 %v1200
    %v1233 = vunpack.c.l.b16 %v1201
    %v1234 = vunpack.c.l.b16 %v1202
    %v1235 = vunpack.c.l.b16 %v1203
    %v1236 = vunpack.c.l.b16 %v1204
    %v1237 = vunpack.c.l.b16 %v1205
    %v1238 = vunpack.c.l.b16 %v1206
    %v1239 = vunpack.c.l.b16 %v1207
    %v1240 = vunpack.c.l.b16 %v1208
    %v1241 = vunpack.c.l.b16 %v1209
    %v1242 = vunpack.c.l.b16 %v1210
    %v1243 = vunpack.c.l.b16 %v1211
    %v1244 = vunpack.c.l.b16 %v1212
    %v1245 = vunpack.c.l.b16 %v1213
    %v1246 = vunpack.c.l.b16 %v1214
    %v1247 = vunpack.c.l.b16 %v1215
    %v1248 = vpack.c.b16 %v1233, %v1232
    %v1249 = vpack.c.b16 %v1235, %v1234
    %v1250 = vpack.c.b16 %v1237, %v1236
    %v1251 = vpack.c.b16 %v1239, %v1238
    %v1252 = vpack.c.b16 %v1241, %v1240
    %v1253 = vpack.c.b16 %v1243, %v1242
    %v1254 = vpack.c.b16 %v1245, %v1244
    %v1255 = vpack.c.b16 %v1247, %v1246
    %1264 = vmatprep.subr.bf16.mxu0 0
    %1265 = vmatpush1.bf16.msra.mxu0 %v1255
    %1266 = vmatprep.subr.bf16.mxu0 0
    %1267 = vmatpush1.bf16.msra.mxu0 %v1254
    %1268 = vmatprep.subr.bf16.mxu0 0
    %1269 = vmatpush1.bf16.msra.mxu0 %v1253
    %1270 = vmatprep.subr.bf16.mxu0 0
    %1271 = vmatpush1.bf16.msra.mxu0 %v1252
    %1272 = vmatprep.subr.bf16.mxu0 0
    %1273 = vmatpush1.bf16.msra.mxu0 %v1251
    %1274 = vmatprep.subr.bf16.mxu0 0
    %1275 = vmatpush1.bf16.msra.mxu0 %v1250
    %1276 = vmatprep.subr.bf16.mxu0 0
    %1277 = vmatpush1.bf16.msra.mxu0 %v1249
    %1278 = vmatprep.subr.bf16.mxu0 0
    %1279 = vmatpush1.bf16.msra.mxu0 %v1248
    %1280 = vmatprep.subr.bf16.mxu0 0
    %1281 = vmatpush2.bf16.msra.mxu0 0
    %1282 = vmatprep.subr.bf16.mxu0 0
    %1283 = vmatpush2.bf16.msra.mxu0 0
    %1284 = vmatprep.subr.bf16.mxu0 0
    %1285 = vmatpush2.bf16.msra.mxu0 0
    %1286 = vmatprep.subr.bf16.mxu0 0
    %1287 = vmatpush2.bf16.msra.mxu0 0
    %1288 = vmatprep.subr.bf16.mxu0 0
    %1289 = vmatpush2.bf16.msra.mxu0 0
    %1290 = vmatprep.subr.bf16.mxu0 0
    %1291 = vmatpush2.bf16.msra.mxu0 0
    %1292 = vmatprep.subr.bf16.mxu0 0
    %1293 = vmatpush2.bf16.msra.mxu0 0
    %1294 = vmatprep.subr.bf16.mxu0 0
    %1295 = vmatpush2.bf16.msra.mxu0 0
    %1296 = vmatprep.mubr.bf16.mxu0 0
    %1297 = vmatmul.mubr.bf16.gmra.mxu0 %v1192
    %v1298 = vpop.f32.mrf.mxu0
    %v1299 = vadd.f32 0.0, %v1298
    %v1300 = vpop.f32.mrf.mxu0
    %v1301 = vpop.f32.mrf.mxu0
    %v1302 = vadd.f32 0.0, %v1301
    %v1303 = vpop.f32.mrf.mxu0
    %1304 = vmatprep.mubr.bf16.mxu0 0
    %1305 = vmatmul.mubr.bf16.gmra.mxu0 %v1193
    %v1306 = vpop.f32.mrf.mxu0
    %v1307 = vadd.f32 0.0, %v1306
    %v1308 = vpop.f32.mrf.mxu0
    %v1309 = vpop.f32.mrf.mxu0
    %v1310 = vadd.f32 0.0, %v1309
    %v1311 = vpop.f32.mrf.mxu0
    %1312 = vmatprep.mubr.bf16.mxu0 0
    %1313 = vmatmul.mubr.bf16.gmra.mxu0 %v1194
    %v1314 = vpop.f32.mrf.mxu0
    %v1315 = vadd.f32 0.0, %v1314
    %v1316 = vpop.f32.mrf.mxu0
    %v1317 = vpop.f32.mrf.mxu0
    %v1318 = vadd.f32 0.0, %v1317
    %v1319 = vpop.f32.mrf.mxu0
    %1320 = vmatprep.mubr.bf16.mxu0 0
    %1321 = vmatmul.mubr.bf16.gmra.mxu0 %v1195
    %v1322 = vpop.f32.mrf.mxu0
    %v1323 = vadd.f32 0.0, %v1322
    %v1324 = vpop.f32.mrf.mxu0
    %v1325 = vpop.f32.mrf.mxu0
    %v1326 = vadd.f32 0.0, %v1325
    %v1327 = vpop.f32.mrf.mxu0
    %1328 = vmatprep.mubr.bf16.mxu0 0
    %1329 = vmatmul.mubr.bf16.gmra.mxu0 %v1196
    %v1330 = vpop.f32.mrf.mxu0
    %v1331 = vadd.f32 0.0, %v1330
    %v1332 = vpop.f32.mrf.mxu0
    %v1333 = vpop.f32.mrf.mxu0
    %v1334 = vadd.f32 0.0, %v1333
    %v1335 = vpop.f32.mrf.mxu0
    %1336 = vmatprep.mubr.bf16.mxu0 0
    %1337 = vmatmul.mubr.bf16.gmra.mxu0 %v1197
    %v1338 = vpop.f32.mrf.mxu0
    %v1339 = vadd.f32 0.0, %v1338
    %v1340 = vpop.f32.mrf.mxu0
    %v1341 = vpop.f32.mrf.mxu0
    %v1342 = vadd.f32 0.0, %v1341
    %v1343 = vpop.f32.mrf.mxu0
    %1344 = vmatprep.mubr.bf16.mxu0 0
    %1345 = vmatmul.mubr.bf16.gmra.mxu0 %v1198
    %v1346 = vpop.f32.mrf.mxu0
    %v1347 = vadd.f32 0.0, %v1346
    %v1348 = vpop.f32.mrf.mxu0
    %v1349 = vpop.f32.mrf.mxu0
    %v1350 = vadd.f32 0.0, %v1349
    %v1351 = vpop.f32.mrf.mxu0
    %1352 = vmatprep.mubr.bf16.mxu0 0
    %1353 = vmatmul.mubr.bf16.gmra.mxu0 %v1199
    %v1354 = vpop.f32.mrf.mxu0
    %v1355 = vadd.f32 0.0, %v1354
    %v1356 = vpop.f32.mrf.mxu0
    %v1357 = vpop.f32.mrf.mxu0
    %v1358 = vadd.f32 0.0, %v1357
    %v1359 = vpop.f32.mrf.mxu0
    %1360 = vdwg.mxu0
    %v1361 = vpack.c.bf16 %v1302, %v1299
    %v1362 = vpack.c.bf16 %v1310, %v1307
    %v1363 = vpack.c.bf16 %v1318, %v1315
    %v1364 = vpack.c.bf16 %v1326, %v1323
    %v1365 = vpack.c.bf16 %v1334, %v1331
    %v1366 = vpack.c.bf16 %v1342, %v1339
    %v1367 = vpack.c.bf16 %v1350, %v1347
    %v1368 = vpack.c.bf16 %v1358, %v1355
    %v1369 = vld [vmem:[%s7] sm:$0x1]
    %v1371 = vlaneseq
    %v1372 = vshrl.u32 %v1371, 7
    %v1373 = vsub.s32 0, %v1372
    %v1374 = vrot.slane %v1369, %v1373
    %1376 = vmatprep.subr.bf16.mxu0 0
    %1377 = vmatpush1.bf16.msra.mxu0 %v1368
    %1378 = vmatprep.subr.bf16.mxu0 0
    %1379 = vmatpush1.bf16.msra.mxu0 %v1367
    %1380 = vmatprep.subr.bf16.mxu0 0
    %1381 = vmatpush1.bf16.msra.mxu0 %v1366
    %1382 = vmatprep.subr.bf16.mxu0 0
    %1383 = vmatpush1.bf16.msra.mxu0 %v1365
    %1384 = vmatprep.subr.bf16.mxu0 0
    %1385 = vmatpush1.bf16.msra.mxu0 %v1364
    %1386 = vmatprep.subr.bf16.mxu0 0
    %1387 = vmatpush1.bf16.msra.mxu0 %v1363
    %1388 = vmatprep.subr.bf16.mxu0 0
    %1389 = vmatpush1.bf16.msra.mxu0 %v1362
    %1390 = vmatprep.subr.bf16.mxu0 0
    %1391 = vmatpush1.bf16.msra.mxu0 %v1361
    %1392 = vmatprep.subr.bf16.mxu0 0
    %1393 = vmatpush2.bf16.msra.mxu0 0
    %1394 = vmatprep.subr.bf16.mxu0 0
    %1395 = vmatpush2.bf16.msra.mxu0 0
    %1396 = vmatprep.subr.bf16.mxu0 0
    %1397 = vmatpush2.bf16.msra.mxu0 0
    %1398 = vmatprep.subr.bf16.mxu0 0
    %1399 = vmatpush2.bf16.msra.mxu0 0
    %1400 = vmatprep.subr.bf16.mxu0 0
    %1401 = vmatpush2.bf16.msra.mxu0 0
    %1402 = vmatprep.subr.bf16.mxu0 0
    %1403 = vmatpush2.bf16.msra.mxu0 0
    %1404 = vmatprep.subr.bf16.mxu0 0
    %1405 = vmatpush2.bf16.msra.mxu0 0
    %1406 = vmatprep.subr.bf16.mxu0 0
    %1407 = vmatpush2.bf16.msra.mxu0 0
    %1408 = vmatprep.mubr.bf16.mxu0 0
    %1409 = vmatmul.mubr.bf16.gmra.mxu0 %v156
    %v1410 = vpop.f32.mrf.mxu0
    %v1411 = vadd.f32 %v1374, %v1410
    %v1412 = vpop.f32.mrf.mxu0
    %v1413 = vpop.f32.mrf.mxu0
    %v1414 = vadd.f32 %v1374, %v1413
    %v1415 = vpop.f32.mrf.mxu0
    %1416 = vmatprep.mubr.bf16.mxu0 0
    %1417 = vmatmul.mubr.bf16.gmra.mxu0 %v157
    %v1418 = vpop.f32.mrf.mxu0
    %v1419 = vadd.f32 %v1374, %v1418
    %v1420 = vpop.f32.mrf.mxu0
    %v1421 = vpop.f32.mrf.mxu0
    %v1422 = vadd.f32 %v1374, %v1421
    %v1423 = vpop.f32.mrf.mxu0
    %1424 = vmatprep.mubr.bf16.mxu0 0
    %1425 = vmatmul.mubr.bf16.gmra.mxu0 %v158
    %v1426 = vpop.f32.mrf.mxu0
    %v1427 = vadd.f32 %v1374, %v1426
    %v1428 = vpop.f32.mrf.mxu0
    %v1429 = vpop.f32.mrf.mxu0
    %v1430 = vadd.f32 %v1374, %v1429
    %v1431 = vpop.f32.mrf.mxu0
    %1432 = vmatprep.mubr.bf16.mxu0 0
    %1433 = vmatmul.mubr.bf16.gmra.mxu0 %v159
    %v1434 = vpop.f32.mrf.mxu0
    %v1435 = vadd.f32 %v1374, %v1434
    %v1436 = vpop.f32.mrf.mxu0
    %v1437 = vpop.f32.mrf.mxu0
    %v1438 = vadd.f32 %v1374, %v1437
    %v1439 = vpop.f32.mrf.mxu0
    %1440 = vmatprep.mubr.bf16.mxu0 0
    %1441 = vmatmul.mubr.bf16.gmra.mxu0 %v160
    %v1442 = vpop.f32.mrf.mxu0
    %v1443 = vadd.f32 %v1374, %v1442
    %v1444 = vpop.f32.mrf.mxu0
    %v1445 = vpop.f32.mrf.mxu0
    %v1446 = vadd.f32 %v1374, %v1445
    %v1447 = vpop.f32.mrf.mxu0
    %1448 = vmatprep.mubr.bf16.mxu0 0
    %1449 = vmatmul.mubr.bf16.gmra.mxu0 %v161
    %v1450 = vpop.f32.mrf.mxu0
    %v1451 = vadd.f32 %v1374, %v1450
    %v1452 = vpop.f32.mrf.mxu0
    %v1453 = vpop.f32.mrf.mxu0
    %v1454 = vadd.f32 %v1374, %v1453
    %v1455 = vpop.f32.mrf.mxu0
    %1456 = vmatprep.mubr.bf16.mxu0 0
    %1457 = vmatmul.mubr.bf16.gmra.mxu0 %v162
    %v1458 = vpop.f32.mrf.mxu0
    %v1459 = vadd.f32 %v1374, %v1458
    %v1460 = vpop.f32.mrf.mxu0
    %v1461 = vpop.f32.mrf.mxu0
    %v1462 = vadd.f32 %v1374, %v1461
    %v1463 = vpop.f32.mrf.mxu0
    %1464 = vmatprep.mubr.bf16.mxu0 0
    %1465 = vmatmul.mubr.bf16.gmra.mxu0 %v163
    %v1466 = vpop.f32.mrf.mxu0
    %v1467 = vadd.f32 %v1374, %v1466
    %v1468 = vpop.f32.mrf.mxu0
    %v1469 = vpop.f32.mrf.mxu0
    %v1470 = vadd.f32 %v1374, %v1469
    %v1471 = vpop.f32.mrf.mxu0
    %1472 = vdwg.mxu0
    %v1473 = vmul.f32 %v1411, %v320
    %v1474 = vmul.f32 %v1414, %v325
    %v1475 = vmul.f32 %v1419, %v330
    %v1476 = vmul.f32 %v1422, %v335
    %v1477 = vmul.f32 %v1427, %v340
    %v1478 = vmul.f32 %v1430, %v345
    %v1479 = vmul.f32 %v1435, %v350
    %v1480 = vmul.f32 %v1438, %v355
    %v1481 = vmul.f32 %v1443, %v360
    %v1482 = vmul.f32 %v1446, %v365
    %v1483 = vmul.f32 %v1451, %v370
    %v1484 = vmul.f32 %v1454, %v375
    %v1485 = vmul.f32 %v1459, %v380
    %v1486 = vmul.f32 %v1462, %v385
    %v1487 = vmul.f32 %v1467, %v390
    %v1488 = vmul.f32 %v1470, %v395
    %v1489 = vadd.f32 %v1473, %v1474
    %v1490 = vrot.slane %v1489, 4
    %v1491 = vadd.f32 %v1489, %v1490
    %v1492 = vrot.slane %v1491, 2
    %v1493 = vadd.f32 %v1491, %v1492
    %v1494 = vrot.slane %v1493, 1
    %v1495 = vadd.f32 %v1493, %v1494
    %v1496 = vadd.f32 %v1475, %v1476
    %v1497 = vrot.slane %v1496, 4
    %v1498 = vadd.f32 %v1496, %v1497
    %v1499 = vrot.slane %v1498, 2
    %v1500 = vadd.f32 %v1498, %v1499
    %v1501 = vrot.slane %v1500, 1
    %v1502 = vadd.f32 %v1500, %v1501
    %v1503 = vadd.f32 %v1477, %v1478
    %v1504 = vrot.slane %v1503, 4
    %v1505 = vadd.f32 %v1503, %v1504
    %v1506 = vrot.slane %v1505, 2
    %v1507 = vadd.f32 %v1505, %v1506
    %v1508 = vrot.slane %v1507, 1
    %v1509 = vadd.f32 %v1507, %v1508
    %v1510 = vadd.f32 %v1479, %v1480
    %v1511 = vrot.slane %v1510, 4
    %v1512 = vadd.f32 %v1510, %v1511
    %v1513 = vrot.slane %v1512, 2
    %v1514 = vadd.f32 %v1512, %v1513
    %v1515 = vrot.slane %v1514, 1
    %v1516 = vadd.f32 %v1514, %v1515
    %v1517 = vadd.f32 %v1481, %v1482
    %v1518 = vrot.slane %v1517, 4
    %v1519 = vadd.f32 %v1517, %v1518
    %v1520 = vrot.slane %v1519, 2
    %v1521 = vadd.f32 %v1519, %v1520
    %v1522 = vrot.slane %v1521, 1
    %v1523 = vadd.f32 %v1521, %v1522
    %v1524 = vadd.f32 %v1483, %v1484
    %v1525 = vrot.slane %v1524, 4
    %v1526 = vadd.f32 %v1524, %v1525
    %v1527 = vrot.slane %v1526, 2
    %v1528 = vadd.f32 %v1526, %v1527
    %v1529 = vrot.slane %v1528, 1
    %v1530 = vadd.f32 %v1528, %v1529
    %v1531 = vadd.f32 %v1485, %v1486
    %v1532 = vrot.slane %v1531, 4
    %v1533 = vadd.f32 %v1531, %v1532
    %v1534 = vrot.slane %v1533, 2
    %v1535 = vadd.f32 %v1533, %v1534
    %v1536 = vrot.slane %v1535, 1
    %v1537 = vadd.f32 %v1535, %v1536
    %v1538 = vadd.f32 %v1487, %v1488
    %v1539 = vrot.slane %v1538, 4
    %v1540 = vadd.f32 %v1538, %v1539
    %v1541 = vrot.slane %v1540, 2
    %v1542 = vadd.f32 %v1540, %v1541
    %v1543 = vrot.slane %v1542, 1
    %v1544 = vadd.f32 %v1542, %v1543
    %v1545 = vmul.f32 %v1473, %v1411
    %v1546 = vmul.f32 %v1474, %v1414
    %v1547 = vmul.f32 %v1475, %v1419
    %v1548 = vmul.f32 %v1476, %v1422
    %v1549 = vmul.f32 %v1477, %v1427
    %v1550 = vmul.f32 %v1478, %v1430
    %v1551 = vmul.f32 %v1479, %v1435
    %v1552 = vmul.f32 %v1480, %v1438
    %v1553 = vmul.f32 %v1481, %v1443
    %v1554 = vmul.f32 %v1482, %v1446
    %v1555 = vmul.f32 %v1483, %v1451
    %v1556 = vmul.f32 %v1484, %v1454
    %v1557 = vmul.f32 %v1485, %v1459
    %v1558 = vmul.f32 %v1486, %v1462
    %v1559 = vmul.f32 %v1487, %v1467
    %v1560 = vmul.f32 %v1488, %v1470
    %v1561 = vadd.f32 %v1545, %v1546
    %v1562 = vrot.slane %v1561, 4
    %v1563 = vadd.f32 %v1561, %v1562
    %v1564 = vrot.slane %v1563, 2
    %v1565 = vadd.f32 %v1563, %v1564
    %v1566 = vrot.slane %v1565, 1
    %v1567 = vadd.f32 %v1565, %v1566
    %v1568 = vadd.f32 %v1547, %v1548
    %v1569 = vrot.slane %v1568, 4
    %v1570 = vadd.f32 %v1568, %v1569
    %v1571 = vrot.slane %v1570, 2
    %v1572 = vadd.f32 %v1570, %v1571
    %v1573 = vrot.slane %v1572, 1
    %v1574 = vadd.f32 %v1572, %v1573
    %v1575 = vadd.f32 %v1549, %v1550
    %v1576 = vrot.slane %v1575, 4
    %v1577 = vadd.f32 %v1575, %v1576
    %v1578 = vrot.slane %v1577, 2
    %v1579 = vadd.f32 %v1577, %v1578
    %v1580 = vrot.slane %v1579, 1
    %v1581 = vadd.f32 %v1579, %v1580
    %v1582 = vadd.f32 %v1551, %v1552
    %v1583 = vrot.slane %v1582, 4
    %v1584 = vadd.f32 %v1582, %v1583
    %v1585 = vrot.slane %v1584, 2
    %v1586 = vadd.f32 %v1584, %v1585
    %v1587 = vrot.slane %v1586, 1
    %v1588 = vadd.f32 %v1586, %v1587
    %v1589 = vadd.f32 %v1553, %v1554
    %v1590 = vrot.slane %v1589, 4
    %v1591 = vadd.f32 %v1589, %v1590
    %v1592 = vrot.slane %v1591, 2
    %v1593 = vadd.f32 %v1591, %v1592
    %v1594 = vrot.slane %v1593, 1
    %v1595 = vadd.f32 %v1593, %v1594
    %v1596 = vadd.f32 %v1555, %v1556
    %v1597 = vrot.slane %v1596, 4
    %v1598 = vadd.f32 %v1596, %v1597
    %v1599 = vrot.slane %v1598, 2
    %v1600 = vadd.f32 %v1598, %v1599
    %v1601 = vrot.slane %v1600, 1
    %v1602 = vadd.f32 %v1600, %v1601
    %v1603 = vadd.f32 %v1557, %v1558
    %v1604 = vrot.slane %v1603, 4
    %v1605 = vadd.f32 %v1603, %v1604
    %v1606 = vrot.slane %v1605, 2
    %v1607 = vadd.f32 %v1605, %v1606
    %v1608 = vrot.slane %v1607, 1
    %v1609 = vadd.f32 %v1607, %v1608
    %v1610 = vadd.f32 %v1559, %v1560
    %v1611 = vrot.slane %v1610, 4
    %v1612 = vadd.f32 %v1610, %v1611
    %v1613 = vrot.slane %v1612, 2
    %v1614 = vadd.f32 %v1612, %v1613
    %v1615 = vrot.slane %v1614, 1
    %v1616 = vadd.f32 %v1614, %v1615
    %v1617 = vmul.f32 %v1495, %v1495
    %v1618 = vmul.f32 %v1502, %v1502
    %v1619 = vmul.f32 %v1509, %v1509
    %v1620 = vmul.f32 %v1516, %v1516
    %v1621 = vmul.f32 %v1523, %v1523
    %v1622 = vmul.f32 %v1530, %v1530
    %v1623 = vmul.f32 %v1537, %v1537
    %v1624 = vmul.f32 %v1544, %v1544
    %v1625 = vsub.f32 %v1567, %v1617
    %v1626 = vsub.f32 %v1574, %v1618
    %v1627 = vsub.f32 %v1581, %v1619
    %v1628 = vsub.f32 %v1588, %v1620
    %v1629 = vsub.f32 %v1595, %v1621
    %v1630 = vsub.f32 %v1602, %v1622
    %v1631 = vsub.f32 %v1609, %v1623
    %v1632 = vsub.f32 %v1616, %v1624
    %v1633 = vmax.f32 %v1625, 0.0
    %v1634 = vmax.f32 %v1626, 0.0
    %v1635 = vmax.f32 %v1627, 0.0
    %v1636 = vmax.f32 %v1628, 0.0
    %v1637 = vmax.f32 %v1629, 0.0
    %v1638 = vmax.f32 %v1630, 0.0
    %v1639 = vmax.f32 %v1631, 0.0
    %v1640 = vmax.f32 %v1632, 0.0
    %v1641 = vadd.f32 %v1633, 1e-05
    %v1642 = vadd.f32 %v1634, 1e-05
    %v1643 = vadd.f32 %v1635, 1e-05
    %v1644 = vadd.f32 %v1636, 1e-05
    %v1645 = vadd.f32 %v1637, 1e-05
    %v1646 = vadd.f32 %v1638, 1e-05
    %v1647 = vadd.f32 %v1639, 1e-05
    %v1648 = vadd.f32 %v1640, 1e-05
    %v1649 = vrsqrt.pop %v1641
    %v1650 = vrsqrt.pop %v1642
    %v1651 = vrsqrt.pop %v1643
    %v1652 = vrsqrt.pop %v1644
    %v1653 = vrsqrt.pop %v1645
    %v1654 = vrsqrt.pop %v1646
    %v1655 = vrsqrt.pop %v1647
    %v1656 = vrsqrt.pop %v1648
    %v1657 = vmul.f32 %v1649, %v581
    %v1658 = vmul.f32 %v1650, %v581
    %v1659 = vmul.f32 %v1651, %v581
    %v1660 = vmul.f32 %v1652, %v581
    %v1661 = vmul.f32 %v1653, %v581
    %v1662 = vmul.f32 %v1654, %v581
    %v1663 = vmul.f32 %v1655, %v581
    %v1664 = vmul.f32 %v1656, %v581
    %v1665 = vmul.f32 %v1411, %v1657
    %v1666 = vmul.f32 %v1414, %v1657
    %v1667 = vmul.f32 %v1419, %v1658
    %v1668 = vmul.f32 %v1422, %v1658
    %v1669 = vmul.f32 %v1427, %v1659
    %v1670 = vmul.f32 %v1430, %v1659
    %v1671 = vmul.f32 %v1435, %v1660
    %v1672 = vmul.f32 %v1438, %v1660
    %v1673 = vmul.f32 %v1443, %v1661
    %v1674 = vmul.f32 %v1446, %v1661
    %v1675 = vmul.f32 %v1451, %v1662
    %v1676 = vmul.f32 %v1454, %v1662
    %v1677 = vmul.f32 %v1459, %v1663
    %v1678 = vmul.f32 %v1462, %v1663
    %v1679 = vmul.f32 %v1467, %v1664
    %v1680 = vmul.f32 %v1470, %v1664
    %v1681 = vmul.f32 %v1495, %v1657
    %v1682 = vmul.f32 %v1502, %v1658
    %v1683 = vmul.f32 %v1509, %v1659
    %v1684 = vmul.f32 %v1516, %v1660
    %v1685 = vmul.f32 %v1523, %v1661
    %v1686 = vmul.f32 %v1530, %v1662
    %v1687 = vmul.f32 %v1537, %v1663
    %v1688 = vmul.f32 %v1544, %v1664
    %v1689 = vsub.f32 %v614, %v1681
    %v1690 = vsub.f32 %v614, %v1682
    %v1691 = vsub.f32 %v614, %v1683
    %v1692 = vsub.f32 %v614, %v1684
    %v1693 = vsub.f32 %v614, %v1685
    %v1694 = vsub.f32 %v614, %v1686
    %v1695 = vsub.f32 %v614, %v1687
    %v1696 = vsub.f32 %v614, %v1688
    %v1697 = vadd.f32 %v1665, %v1689
    %v1698 = vadd.f32 %v1666, %v1689
    %v1699 = vadd.f32 %v1667, %v1690
    %v1700 = vadd.f32 %v1668, %v1690
    %v1701 = vadd.f32 %v1669, %v1691
    %v1702 = vadd.f32 %v1670, %v1691
    %v1703 = vadd.f32 %v1671, %v1692
    %v1704 = vadd.f32 %v1672, %v1692
    %v1705 = vadd.f32 %v1673, %v1693
    %v1706 = vadd.f32 %v1674, %v1693
    %v1707 = vadd.f32 %v1675, %v1694
    %v1708 = vadd.f32 %v1676, %v1694
    %v1709 = vadd.f32 %v1677, %v1695
    %v1710 = vadd.f32 %v1678, %v1695
    %v1711 = vadd.f32 %v1679, %v1696
    %v1712 = vadd.f32 %v1680, %v1696
    %v1713 = vmax.f32 %v1697, 0.0
    %v1714 = vmax.f32 %v1698, 0.0
    %v1715 = vmax.f32 %v1699, 0.0
    %v1716 = vmax.f32 %v1700, 0.0
    %v1717 = vmax.f32 %v1701, 0.0
    %v1718 = vmax.f32 %v1702, 0.0
    %v1719 = vmax.f32 %v1703, 0.0
    %v1720 = vmax.f32 %v1704, 0.0
    %v1721 = vmax.f32 %v1705, 0.0
    %v1722 = vmax.f32 %v1706, 0.0
    %v1723 = vmax.f32 %v1707, 0.0
    %v1724 = vmax.f32 %v1708, 0.0
    %v1725 = vmax.f32 %v1709, 0.0
    %v1726 = vmax.f32 %v1710, 0.0
    %v1727 = vmax.f32 %v1711, 0.0
    %v1728 = vmax.f32 %v1712, 0.0
    %v1729 = vpack.c.bf16 %v1714, %v1713
    %v1730 = vpack.c.bf16 %v1716, %v1715
    %v1731 = vpack.c.bf16 %v1718, %v1717
    %v1732 = vpack.c.bf16 %v1720, %v1719
    %v1733 = vpack.c.bf16 %v1722, %v1721
    %v1734 = vpack.c.bf16 %v1724, %v1723
    %v1735 = vpack.c.bf16 %v1726, %v1725
    %v1736 = vpack.c.bf16 %v1728, %v1727
    %v1737 = vunpack.c.l.bf16 %v1729
    %v1738 = vunpack.c.h.bf16 %v1729
    %v1739 = vunpack.c.l.bf16 %v1730
    %v1740 = vunpack.c.h.bf16 %v1730
    %v1741 = vunpack.c.l.bf16 %v1731
    %v1742 = vunpack.c.h.bf16 %v1731
    %v1743 = vunpack.c.l.bf16 %v1732
    %v1744 = vunpack.c.h.bf16 %v1732
    %v1745 = vunpack.c.l.bf16 %v1733
    %v1746 = vunpack.c.h.bf16 %v1733
    %v1747 = vunpack.c.l.bf16 %v1734
    %v1748 = vunpack.c.h.bf16 %v1734
    %v1749 = vunpack.c.l.bf16 %v1735
    %v1750 = vunpack.c.h.bf16 %v1735
    %v1751 = vunpack.c.l.bf16 %v1736
    %v1752 = vunpack.c.h.bf16 %v1736
    %v1753 = vmul.f32 %v1737, %v320
    %v1754 = vmul.f32 %v1738, %v325
    %v1755 = vmul.f32 %v1739, %v330
    %v1756 = vmul.f32 %v1740, %v335
    %v1757 = vmul.f32 %v1741, %v340
    %v1758 = vmul.f32 %v1742, %v345
    %v1759 = vmul.f32 %v1743, %v350
    %v1760 = vmul.f32 %v1744, %v355
    %v1761 = vmul.f32 %v1745, %v360
    %v1762 = vmul.f32 %v1746, %v365
    %v1763 = vmul.f32 %v1747, %v370
    %v1764 = vmul.f32 %v1748, %v375
    %v1765 = vmul.f32 %v1749, %v380
    %v1766 = vmul.f32 %v1750, %v385
    %v1767 = vmul.f32 %v1751, %v390
    %v1768 = vmul.f32 %v1752, %v395
    %v1769 = vadd.f32 %v1753, %v1754
    %v1770 = vrot.slane %v1769, 4
    %v1771 = vadd.f32 %v1769, %v1770
    %v1772 = vrot.slane %v1771, 2
    %v1773 = vadd.f32 %v1771, %v1772
    %v1774 = vrot.slane %v1773, 1
    %v1775 = vadd.f32 %v1773, %v1774
    %v1776 = vadd.f32 %v1755, %v1756
    %v1777 = vrot.slane %v1776, 4
    %v1778 = vadd.f32 %v1776, %v1777
    %v1779 = vrot.slane %v1778, 2
    %v1780 = vadd.f32 %v1778, %v1779
    %v1781 = vrot.slane %v1780, 1
    %v1782 = vadd.f32 %v1780, %v1781
    %v1783 = vadd.f32 %v1757, %v1758
    %v1784 = vrot.slane %v1783, 4
    %v1785 = vadd.f32 %v1783, %v1784
    %v1786 = vrot.slane %v1785, 2
    %v1787 = vadd.f32 %v1785, %v1786
    %v1788 = vrot.slane %v1787, 1
    %v1789 = vadd.f32 %v1787, %v1788
    %v1790 = vadd.f32 %v1759, %v1760
    %v1791 = vrot.slane %v1790, 4
    %v1792 = vadd.f32 %v1790, %v1791
    %v1793 = vrot.slane %v1792, 2
    %v1794 = vadd.f32 %v1792, %v1793
    %v1795 = vrot.slane %v1794, 1
    %v1796 = vadd.f32 %v1794, %v1795
    %v1797 = vadd.f32 %v1761, %v1762
    %v1798 = vrot.slane %v1797, 4
    %v1799 = vadd.f32 %v1797, %v1798
    %v1800 = vrot.slane %v1799, 2
    %v1801 = vadd.f32 %v1799, %v1800
    %v1802 = vrot.slane %v1801, 1
    %v1803 = vadd.f32 %v1801, %v1802
    %v1804 = vadd.f32 %v1763, %v1764
    %v1805 = vrot.slane %v1804, 4
    %v1806 = vadd.f32 %v1804, %v1805
    %v1807 = vrot.slane %v1806, 2
    %v1808 = vadd.f32 %v1806, %v1807
    %v1809 = vrot.slane %v1808, 1
    %v1810 = vadd.f32 %v1808, %v1809
    %v1811 = vadd.f32 %v1765, %v1766
    %v1812 = vrot.slane %v1811, 4
    %v1813 = vadd.f32 %v1811, %v1812
    %v1814 = vrot.slane %v1813, 2
    %v1815 = vadd.f32 %v1813, %v1814
    %v1816 = vrot.slane %v1815, 1
    %v1817 = vadd.f32 %v1815, %v1816
    %v1818 = vadd.f32 %v1767, %v1768
    %v1819 = vrot.slane %v1818, 4
    %v1820 = vadd.f32 %v1818, %v1819
    %v1821 = vrot.slane %v1820, 2
    %v1822 = vadd.f32 %v1820, %v1821
    %v1823 = vrot.slane %v1822, 1
    %v1824 = vadd.f32 %v1822, %v1823
    %vm1833 = vcmask 1041409
    %v1834 = vsel %vm1833, %v1782, %v1775
    %vm1835 = vcmask 1042434
    %v1836 = vsel %vm1835, %v1789, %v1834
    %vm1837 = vcmask 1043459
    %v1838 = vsel %vm1837, %v1796, %v1836
    %vm1839 = vcmask 1044484
    %v1840 = vsel %vm1839, %v1803, %v1838
    %vm1841 = vcmask 1045509
    %v1842 = vsel %vm1841, %v1810, %v1840
    %vm1843 = vcmask 1046534
    %v1844 = vsel %vm1843, %v1817, %v1842
    %vm1845 = vcmask 1047559
    %v1846 = vsel %vm1845, %v1824, %v1844
    %1848 = vst [vmem:[#allocation9] sm:$0xff] %v1846
    // Predicated region
    $region50: #{tpu_custom_call.1} parent=1 // pred_check
      _
    $region51: #{tpu_custom_call.1} parent=1 // pred_check_branch
      %1850 = sbr.rel (0) target = $region53
    $region52: #{tpu_custom_call.1} parent=1 // pred_region
      %s1852 = ssub.s32 128, 128
      %1853 = vsyncadd [#allocation6], %s1852
      %s1855 = sshll.u32 [#allocation9], 4
      %s1856 = int_to_ptr.vmem [resolvable:$true] %s1855
      %1858 = dma.vmem_to_hbm [thread:$0]  %s1856, 128, %s10, [#allocation6]
    $region53: #{tpu_custom_call.1} parent=1 // pred_fallthru
      _
    // Predicated region
    $region54: #{tpu_custom_call.1} parent=1 // pred_check
      _
    $region55: #{tpu_custom_call.1} parent=1 // pred_check_branch
      %1860 = sbr.rel (0) target = $region57
    $region56: #{tpu_custom_call.1} parent=1 // pred_region
      %1861 = dma.done [#allocation6], 128
    $region57: #{tpu_custom_call.1} parent=1 // pred_fallthru
      _
    %1862 = vsyncpa [#allocation5], 1
    %1863 = vsyncpa [#allocation8], 1
    %1864 = vsyncpa [#allocation6], 1

</llo_original>
